<compile_context>
chip_gen: v7x
topology: tpu7x:2x2x1
jax: 0.10.0
libtpu: 0.0.40
codegen_flags: <defaults>
</compile_context>

<pallas_src>
import functools

import numpy as np
import jax
import jax.numpy as jnp
from jax.experimental import pallas as pl
from jax.experimental.pallas import tpu as pltpu

_LANE = 128
_SUBLANE = 8


# ---------------------------------------------------------------------------
# Padding / layout / hardware helpers (run once at param-prep time)
# ---------------------------------------------------------------------------
def _round_up(x, m):
    return ((x + m - 1) // m) * m


def _pad_to(x, shape):
    pads = [(0, s - d) for d, s in zip(x.shape, shape)]
    return jnp.pad(x, pads)


def _pad_gates(w, h, hp):
    """(..., 4*h) -> (..., 4*hp): pad each of the 4 gate blocks to hp columns
    so every gate starts on a 128-lane boundary."""
    parts = []
    for k in range(4):
        blk = w[..., k * h:(k + 1) * h]
        parts.append(_pad_to(blk, blk.shape[:-1] + (hp,)))
    return jnp.concatenate(parts, axis=-1)


def _vmem_capacity_bytes():
    try:
        info = pltpu.get_tpu_info()
        cap = getattr(info, "vmem_capacity_bytes", None)
        if cap:
            return int(cap)
    except Exception:
        pass
    return 64 * 1024 * 1024            # conservative (v7x per-TC VMEM)


def _vmem_limit_bytes():
    return int(min(_vmem_capacity_bytes() * 3 // 4, 96 * 1024 * 1024))


def _vmem_budget_bytes():
    # Working-set budget used by the tile/chunk heuristics (leave headroom).
    return int(min(_vmem_capacity_bytes() * 3 // 8, 48 * 1024 * 1024))


def _sigmoid(x):
    # sigmoid(x) == 0.5 * (tanh(x/2) + 1): one EUP op + two cheap VPU ops
    # instead of exp + reciprocal on the serial LSTM critical path.
    return 0.5 * jnp.tanh(0.5 * x) + 0.5


def prepare_params(params, *, weight_dtype=jnp.float32, act_dtype=jnp.float32):
    """Zero-pad weights once so every kernel operand is lane aligned.

    hidden is padded to a multiple of 128 lanes; n_actions is kept exact (the
    head output is written compactly).  Matmul weights may be stored in bf16
    (recommended on v6e/v7x); biases, LSTM state and accumulation stay f32.
    """
    H = params["w_hh"].shape[0]
    Hp = _round_up(H, _LANE)
    nb = params["w_phi"].shape[0]
    A = params["w_f2"].shape[1]

    w_ih = _pad_gates(params["w_ih"], H, Hp)                        # (obs, 4Hp)
    w_hh = _pad_to(_pad_gates(params["w_hh"], H, Hp), (Hp, 4 * Hp))
    b_lstm = _pad_gates(params["b_lstm"], H, Hp)                    # (1, 4Hp)

    prepared = {
        # Input projection is hoisted out of the recurrence (plain XLA matmul,
        # kept f32 for accuracy of the gate pre-activations).
        "w_ih": w_ih.astype(jnp.float32),
        "b_lstm": b_lstm.astype(jnp.float32),
        "w_hh": w_hh.astype(weight_dtype),
        "w_phi": _pad_to(params["w_phi"], (nb, Hp)).astype(weight_dtype),
        "b_phi": _pad_to(params["b_phi"], (1, Hp)).astype(jnp.float32),
        "w_f1": _pad_to(params["w_f1"], (Hp, Hp)).astype(weight_dtype),
        "b_f1": _pad_to(params["b_f1"], (1, Hp)).astype(jnp.float32),
        "w_f2": params["w_f2"].astype(weight_dtype),                # (Hp?, A)
        "b_f2": params["b_f2"].astype(jnp.float32),                 # (1, A)
    }
    # Pad w_f2 rows to Hp (columns stay = n_actions, written compactly).
    prepared["w_f2"] = _pad_to(prepared["w_f2"], (Hp, A))
    meta = dict(hidden=H, hidden_pad=Hp, n_basis=nb, n_actions=A,
                act_dtype=jnp.dtype(act_dtype), weight_dtype=jnp.dtype(weight_dtype))
    return prepared, meta


# ---------------------------------------------------------------------------
# Kernel 1: psi — LSTM recurrence over time chunks (input projection hoisted)
# ---------------------------------------------------------------------------
def _lstm_kernel(gx_ref, w_hh_ref, h0_ref, c0_ref,
                 psi_ref, hn_ref, cn_ref, h_sc, c_sc,
                 *, seq_len, needs_mask, unroll):
    chunk = pl.program_id(1)
    t_chunk = gx_ref.shape[0]
    Hp = h0_ref.shape[-1]
    w_dtype = w_hh_ref.dtype

    @pl.when(chunk == 0)
    def _():
        h_sc[...] = h0_ref[...]
        c_sc[...] = c0_ref[...]

    def body(t, carry):
        h, c = carry
        # gates_x (= x @ w_ih + bias) was precomputed outside the recurrence.
        gx_t = gx_ref[t]                                    # (B, 4Hp)
        hw = h.astype(w_dtype)

        # Per-gate matmul reading the (Hp, Hp) slice straight off the VMEM ref
        # so the RHS live range stays one gate's worth of vregs (no spill of
        # the full (Hp, 4Hp) weight inside the unrolled loop).
        # TODO(synk): explicit MXU staging (matmul_push_rhs once per chunk +
        # matmul_acc_lhs per timestep) would also drop the repeated RHS pushes.
        def gate(k):
            pre = jnp.dot(hw, w_hh_ref[:, k * Hp:(k + 1) * Hp],
                          preferred_element_type=jnp.float32)
            return pre + gx_t[:, k * Hp:(k + 1) * Hp].astype(jnp.float32)

        i_g = _sigmoid(gate(0))
        f_g = _sigmoid(gate(1))
        g_g = jnp.tanh(gate(2))
        o_g = _sigmoid(gate(3))
        c_new = f_g * c + i_g * g_g
        h_new = o_g * jnp.tanh(c_new)
        if needs_mask:
            # Time was zero-padded to a multiple of t_chunk; freeze the carry
            # on padded steps so h_n / c_n stay correct.
            valid = (chunk * t_chunk + t) < seq_len
            h_new = jnp.where(valid, h_new, h)
            c_new = jnp.where(valid, c_new, c)
        psi_ref[t] = h_new.astype(psi_ref.dtype)
        return h_new, c_new

    h, c = jax.lax.fori_loop(0, t_chunk, body, (h_sc[...], c_sc[...]),
                             unroll=unroll)
    h_sc[...] = h
    c_sc[...] = c

    @pl.when(chunk == pl.num_programs(1) - 1)
    def _():
        hn_ref[...] = h
        cn_ref[...] = c


def _pick_t_chunk(T):
    if T <= 8:
        return max(T, 1)
    for c in (64, 32, 16, 8):
        if _round_up(T, c) - T <= max(T // 4, 0):
            return c
    return 8


def lstm_psi(gates_x, w_hh, h0, c0, *, t_chunk=None):
    """gates_x: (T, B, 4*Hp) precomputed x@w_ih + bias (f32 or bf16).
    Returns (psi (T, B, Hp) in gates_x.dtype, h_n (B, Hp) f32, c_n (B, Hp) f32)."""
    T, B, G4 = gates_x.shape
    Hp = h0.shape[-1]
    assert G4 == 4 * Hp
    act_dtype = gates_x.dtype
    act_bytes = jnp.dtype(act_dtype).itemsize
    wt_bytes = jnp.dtype(w_hh.dtype).itemsize

    if t_chunk is None:
        t_chunk = _pick_t_chunk(T)
    t_chunk = max(1, int(t_chunk))
    # Keep double-buffered gates/psi blocks + weights inside the VMEM budget.
    budget = _vmem_budget_bytes()

    def _est(tc):
        return (2 * tc * B * 5 * Hp * act_bytes          # gates (4Hp) + psi (Hp)
                + 2 * Hp * 4 * Hp * wt_bytes             # w_hh, double-buffered
                + 4 * 4 * B * Hp)                        # h0/c0/hn/cn + scratch
    while t_chunk > 8 and _est(t_chunk) > budget:
        t_chunk //= 2

    T_pad = _round_up(T, t_chunk)
    if T_pad != T:
        gates_x = jnp.pad(gates_x, ((0, T_pad - T), (0, 0), (0, 0)))
    n_chunks = T_pad // t_chunk
    unroll = True if t_chunk <= 8 else 8

    # Leading "parallel" batch axis: split B across the two v7x TensorCores
    # when each half stays sublane-aligned; no-op (size 1) on v5e/v6e/small B.
    quant = 16 if act_bytes == 2 else _SUBLANE
    n_split = 2 if (B % (2 * quant) == 0 and B >= 2 * quant) else 1
    Bb = B // n_split

    out_shapes = (
        jax.ShapeDtypeStruct((T_pad, B, Hp), act_dtype),
        jax.ShapeDtypeStruct((B, Hp), jnp.float32),
        jax.ShapeDtypeStruct((B, Hp), jnp.float32),
    )
    grid_spec = pltpu.PrefetchScalarGridSpec(
        num_scalar_prefetch=0,
        grid=(n_split, n_chunks),
        in_specs=[
            pl.BlockSpec((t_chunk, Bb, 4 * Hp), lambda s, i: (i, s, 0)),
            pl.BlockSpec((Hp, 4 * Hp), lambda s, i: (0, 0)),
            pl.BlockSpec((Bb, Hp), lambda s, i: (s, 0)),
            pl.BlockSpec((Bb, Hp), lambda s, i: (s, 0)),
        ],
        out_specs=(
            pl.BlockSpec((t_chunk, Bb, Hp), lambda s, i: (i, s, 0)),
            pl.BlockSpec((Bb, Hp), lambda s, i: (s, 0)),
            pl.BlockSpec((Bb, Hp), lambda s, i: (s, 0)),
        ),
        scratch_shapes=[pltpu.VMEM((Bb, Hp), jnp.float32),
                        pltpu.VMEM((Bb, Hp), jnp.float32)],
    )
    kernel = functools.partial(_lstm_kernel, seq_len=T,
                               needs_mask=(T_pad != T), unroll=unroll)
    psi, h_n, c_n = pl.pallas_call(
        kernel,
        out_shape=out_shapes,
        grid_spec=grid_spec,
        # h0 -> h_n, c0 -> c_n share buffers (recurrent-state writeback).
        input_output_aliases={2: 1, 3: 2},
        compiler_params=pltpu.CompilerParams(
            dimension_semantics=("parallel", "arbitrary"),
            vmem_limit_bytes=_vmem_limit_bytes()),
    )(gates_x, w_hh, h0, c0)
    if T_pad != T:
        psi = psi[:T]
    return psi, h_n, c_n


# ---------------------------------------------------------------------------
# Kernel 2: quantile head — cosine basis -> phi -> psi*phi -> f MLP
# ---------------------------------------------------------------------------
def _iqn_head_kernel(psi_ref, taus_ref, wphi_ref, bphi_ref,
                     w1_ref, b1_ref, w2_ref, b2_ref, out_ref):
    psi = psi_ref[...].astype(jnp.float32)  # (tn, Hp), padded cols are zero
    taus = taus_ref[...]                    # (tn, K) f32
    tn, K = taus.shape
    Hp = psi.shape[-1]
    nb = wphi_ref.shape[0]

    # Cosine basis cos(pi * i * tau), i = 1..nb.  The i*pi constant is built
    # once at (1, 1, nb) and broadcast in the multiply (no full-size iota).
    # TODO(synk): bf16 cos on v6e/v7x would halve EUP load but needs an f32
    # range-reduction of the phase first; kept f32 for accuracy/portability.
    i_pi = (jax.lax.broadcasted_iota(jnp.float32, (1, 1, nb), 2) + 1.0) * jnp.pi
    cosb = jnp.cos(taus[:, :, None] * i_pi).reshape(tn * K, nb)

    wphi = wphi_ref[...]
    phi = jnp.maximum(
        jnp.dot(cosb.astype(wphi.dtype), wphi,
                preferred_element_type=jnp.float32) + bphi_ref[...], 0.0)

    # psi broadcast over n_taus.  Hp is a multiple of 128 lanes so these
    # reshapes are tile-aligned sublane regroupings (no relayout copy).
    h = (phi.reshape(tn, K, Hp) * psi[:, None, :]).reshape(tn * K, Hp)

    w1 = w1_ref[...]
    h1 = jnp.maximum(
        jnp.dot(h.astype(w1.dtype), w1,
                preferred_element_type=jnp.float32) + b1_ref[...], 0.0)
    w2 = w2_ref[...]
    out = jnp.dot(h1.astype(w2.dtype), w2,
                  preferred_element_type=jnp.float32) + b2_ref[...]
    # Compact store: last dim == n_actions (full array dim), so no 128-lane
    # zero-padding slab is written to HBM and no padded-slab slice re-read.
    out_ref[...] = out.astype(out_ref.dtype)


def _default_head_tile(n_taus, hidden_pad, n_basis, n_actions,
                       act_bytes, weight_bytes):
    budget = _vmem_budget_bytes()
    # Resident weights/biases (double-buffered by BlockSpec even if constant).
    fixed = (2 * weight_bytes * (n_basis + hidden_pad + n_actions) * hidden_pad
             + 8 * (2 * hidden_pad + n_actions))
    # Per psi-row: double-buffered psi/taus/out blocks + f32 intermediates
    # (cosb, phi, h, h1).
    per_row = (2 * (hidden_pad * act_bytes + n_taus * 4)
               + 2 * n_taus * n_actions * 4
               + 4 * n_taus * (n_basis + 3 * hidden_pad))
    return max(_SUBLANE, (budget - fixed) // max(per_row, 1))


def iqn_quantile_head(psi_x, taus, prepared, meta, *, tile_n=None):
    """psi_x: (N, hidden_pad), taus: (N, K) -> (N, K, n_actions)."""
    N, Hp = psi_x.shape
    K = taus.shape[1]
    nb = meta["n_basis"]
    A = meta["n_actions"]
    act_bytes = jnp.dtype(psi_x.dtype).itemsize
    wt_bytes = jnp.dtype(prepared["w_f1"].dtype).itemsize
    quant = 16 if act_bytes == 2 else _SUBLANE
    n_ceil = _round_up(N, quant)

    if tile_n is None:
        tile_n = _default_head_tile(K, Hp, nb, A, act_bytes, wt_bytes)
    tile_n = min(int(tile_n), 1024, n_ceil)
    if n_ceil >= 2 * quant:
        # Guarantee >=2 grid tiles so the second v7x TensorCore has work.
        tile_n = min(tile_n, max(quant, (n_ceil // 2 // quant) * quant))
    tile_n = max(quant, (tile_n // quant) * quant)

    Np = _round_up(N, tile_n)
    if Np != N:
        psi_x = _pad_to(psi_x, (Np, Hp))
        taus = _pad_to(taus, (Np, K))

    grid_spec = pltpu.PrefetchScalarGridSpec(
        num_scalar_prefetch=0,
        grid=(Np // tile_n,),
        in_specs=[
            pl.BlockSpec((tile_n, Hp), lambda i: (i, 0)),
            pl.BlockSpec((tile_n, K), lambda i: (i, 0)),
            pl.BlockSpec((nb, Hp), lambda i: (0, 0)),
            pl.BlockSpec((1, Hp), lambda i: (0, 0)),
            pl.BlockSpec((Hp, Hp), lambda i: (0, 0)),
            pl.BlockSpec((1, Hp), lambda i: (0, 0)),
            pl.BlockSpec((Hp, A), lambda i: (0, 0)),
            pl.BlockSpec((1, A), lambda i: (0, 0)),
        ],
        out_specs=pl.BlockSpec((tile_n * K, A), lambda i: (i, 0)),
    )
    out = pl.pallas_call(
        _iqn_head_kernel,
        out_shape=jax.ShapeDtypeStruct((Np * K, A), jnp.float32),
        grid_spec=grid_spec,
        compiler_params=pltpu.CompilerParams(
            dimension_semantics=("parallel",),
            vmem_limit_bytes=_vmem_limit_bytes()),
    )(psi_x, taus, prepared["w_phi"], prepared["b_phi"],
      prepared["w_f1"], prepared["b_f1"], prepared["w_f2"], prepared["b_f2"])
    return out.reshape(Np, K, A)[:N]


# ---------------------------------------------------------------------------
# Module wrapper mirroring RecurrentImplicitQuantileQFunction.forward
# ---------------------------------------------------------------------------
def recurrent_iqn_forward(x, recurrent_state, prepared, meta,
                          *, t_chunk=None, tile_n=None):
    """x: (T, B, obs) time-major; recurrent_state = (h0, c0), each (B, hidden).
    Returns (evaluate_with_quantile_thresholds, (h_n, c_n))."""
    # TODO(synk): variable-length PackedSequence (ragged per-sequence lengths)
    # is not handled; all sequences are assumed to share length T.
    h0, c0 = recurrent_state
    T, B, obs = x.shape
    H, Hp = meta["hidden"], meta["hidden_pad"]
    act_dtype = meta["act_dtype"]

    h0p = _pad_to(h0.astype(jnp.float32), (B, Hp))
    c0p = _pad_to(c0.astype(jnp.float32), (B, Hp))

    # Hoisted input projection: one MXU-friendly (T*B, obs) @ (obs, 4*Hp)
    # matmul + bias (plain XLA); only h @ w_hh stays inside the recurrence.
    # The (T, B, 4Hp) gate stream is carried across HBM in act_dtype.
    gates_x = (jnp.dot(x.reshape(T * B, obs), prepared["w_ih"],
                       preferred_element_type=jnp.float32)
               + prepared["b_lstm"]).astype(act_dtype).reshape(T, B, 4 * Hp)

    psi_seq, h_n_p, c_n_p = lstm_psi(gates_x, prepared["w_hh"], h0p, c0p,
                                     t_chunk=t_chunk)
    psi_x = psi_seq.reshape(T * B, Hp)      # padded hidden cols are exactly 0
    h_n, c_n = h_n_p[:, :H], c_n_p[:, :H]

    def evaluate_with_quantile_thresholds(taus):
        assert taus.ndim == 2 and taus.shape[0] == T * B
        return iqn_quantile_head(psi_x, taus.astype(jnp.float32),
                                 prepared, meta, tile_n=tile_n)

    return evaluate_with_quantile_thresholds, (h_n, c_n)


# ---------------------------------------------------------------------------
# Pure-JAX reference (unpadded params) for correctness check
# ---------------------------------------------------------------------------
def _reference(x, h0, c0, taus, p):
    def step(carry, xt):
        h, c = carry
        gates = xt @ p["w_ih"] + h @ p["w_hh"] + p["b_lstm"][0]
        i, f, g, o = jnp.split(gates, 4, axis=-1)
        c = jax.nn.sigmoid(f) * c + jax.nn.sigmoid(i) * jnp.tanh(g)
        h = jax.nn.sigmoid(o) * jnp.tanh(c)
        return (h, c), h

    (h_n, c_n), hs = jax.lax.scan(step, (h0, c0), x)
    psi_x = hs.reshape(-1, hs.shape[-1])
    N, H = psi_x.shape
    K = taus.shape[1]
    nb = p["w_phi"].shape[0]
    i_pi = jnp.arange(1, nb + 1, dtype=jnp.float32) * jnp.pi
    cosb = jnp.cos(taus[:, :, None] * i_pi[None, None, :])
    phi = jax.nn.relu(cosb.reshape(N * K, nb) @ p["w_phi"] + p["b_phi"][0])
    h = (phi.reshape(N, K, H) * psi_x[:, None, :]).reshape(N * K, H)
    h1 = jax.nn.relu(h @ p["w_f1"] + p["b_f1"][0])
    out = (h1 @ p["w_f2"] + p["b_f2"][0]).reshape(N, K, -1)
    return out, h_n, c_n


if __name__ == "__main__":
    # Small shapes: T=4, B=2, obs=8, hidden=64, n_basis=64, n_taus=8, n_actions=4
    T, B, OBS, H, NB, K, A = 4, 2, 8, 64, 64, 8, 4

    key = jax.random.PRNGKey(0)
    ks = jax.random.split(key, 12)

    def u(k, shape, fan_in):
        s = 1.0 / np.sqrt(fan_in)
        return jax.random.uniform(k, shape, jnp.float32, -s, s)

    params = {
        "w_ih": u(ks[0], (OBS, 4 * H), H),
        "w_hh": u(ks[1], (H, 4 * H), H),
        "b_lstm": u(ks[2], (1, 4 * H), H),       # b_ih + b_hh combined
        "w_phi": u(ks[3], (NB, H), NB),
        "b_phi": u(ks[4], (1, H), NB),
        "w_f1": u(ks[5], (H, H), H),
        "b_f1": u(ks[6], (1, H), H),
        "w_f2": u(ks[7], (H, A), H),
        "b_f2": u(ks[8], (1, A), H),
    }

    x = jax.random.normal(ks[9], (T, B, OBS), jnp.float32)   # (T, B, obs)
    h0 = jnp.zeros((B, H), jnp.float32)
    c0 = jnp.zeros((B, H), jnp.float32)
    taus = jax.random.uniform(ks[10], (T * B, K), jnp.float32)

    # Pure-JAX reference.
    ref_q, ref_h, ref_c = _reference(x, h0, c0, taus, params)

    # ---- f32 path (exact-parity check) -------------------------------------
    prepared, meta = prepare_params(params, weight_dtype=jnp.float32,
                                    act_dtype=jnp.float32)
    evaluate, (h_n, c_n) = recurrent_iqn_forward(x, (h0, c0), prepared, meta)
    quantile_q = jax.block_until_ready(evaluate(taus))       # (T*B, K, A)
    h_n = jax.block_until_ready(h_n)
    c_n = jax.block_until_ready(c_n)

    np.testing.assert_allclose(np.asarray(quantile_q), np.asarray(ref_q),
                               rtol=1e-3, atol=1e-3)
    np.testing.assert_allclose(np.asarray(h_n), np.asarray(ref_h),
                               rtol=1e-3, atol=1e-3)
    np.testing.assert_allclose(np.asarray(c_n), np.asarray(ref_c),
                               rtol=1e-3, atol=1e-3)

    # ---- bf16 weights + activations path (production config on v6e/v7x) ----
    # t_chunk=8 > T also exercises the time-padding / masked-carry path.
    prepared_bf, meta_bf = prepare_params(params, weight_dtype=jnp.bfloat16,
                                          act_dtype=jnp.bfloat16)
    evaluate_bf, (h_n_bf, c_n_bf) = recurrent_iqn_forward(
        x, (h0, c0), prepared_bf, meta_bf, t_chunk=8)
    q_bf = jax.block_until_ready(evaluate_bf(taus))
    h_n_bf = jax.block_until_ready(h_n_bf)
    c_n_bf = jax.block_until_ready(c_n_bf)

    np.testing.assert_allclose(np.asarray(q_bf), np.asarray(ref_q),
                               rtol=1e-1, atol=1e-1)
    np.testing.assert_allclose(np.asarray(h_n_bf), np.asarray(ref_h),
                               rtol=1e-1, atol=1e-1)
    np.testing.assert_allclose(np.asarray(c_n_bf), np.asarray(ref_c),
                               rtol=1e-1, atol=1e-1)

    print("KERNEL_OK")
</pallas_src>

<mosaic_0001>
module attributes {stable_mosaic.version = 11 : i64} {
  func.func @_lstm_kernel(%arg0: i32, %arg1: i32, %arg2: memref<4x2x512xf32, #tpu.memory_space<vmem>>, %arg3: memref<128x512xf32, #tpu.memory_space<vmem>>, %arg4: memref<2x128xf32, #tpu.memory_space<vmem>>, %arg5: memref<2x128xf32, #tpu.memory_space<vmem>>, %arg6: memref<4x2x128xf32, #tpu.memory_space<vmem>>, %arg7: memref<2x128xf32, #tpu.memory_space<vmem>>, %arg8: memref<2x128xf32, #tpu.memory_space<vmem>>, %arg9: memref<2x128xf32, #tpu.memory_space<vmem>>, %arg10: memref<2x128xf32, #tpu.memory_space<vmem>>) attributes {dimension_semantics = [#tpu.dimension_semantics<parallel>, #tpu.dimension_semantics<arbitrary>], iteration_bounds = array<i64: 1, 1>, scalar_prefetch = 0 : i64, scratch_operands = 2 : i64, tpu.core_type = #tpu.core_type<tc>, window_params = [{transform_indices = @transform_0, window_bounds = array<i64: 4, 2, 512>}, {pipeline_mode = #tpu.pipeline_mode<synchronous>, transform_indices = @transform_1, window_bounds = array<i64: 128, 512>}, {transform_indices = @transform_2, window_bounds = array<i64: 2, 128>}, {transform_indices = @transform_3, window_bounds = array<i64: 2, 128>}, {transform_indices = @transform_4, window_bounds = array<i64: 4, 2, 128>}, {transform_indices = @transform_5, window_bounds = array<i64: 2, 128>}, {transform_indices = @transform_6, window_bounds = array<i64: 2, 128>}]} {
    %c0_i32 = arith.constant 0 : i32
    %0 = arith.cmpi eq, %arg1, %c0_i32 : i32
    %1 = arith.extui %0 : i1 to i32
    %c0_i32_0 = arith.constant 0 : i32
    %2 = arith.cmpi ne, %1, %c0_i32_0 : i32
    scf.if %2 {
      %c0_107 = arith.constant 0 : index
      %c0_108 = arith.constant 0 : index
      %210 = vector.load %arg4[%c0_107, %c0_108] : memref<2x128xf32, #tpu.memory_space<vmem>>, vector<2x128xf32>
      %c0_109 = arith.constant 0 : index
      %c0_110 = arith.constant 0 : index
      %211 = vector.load %arg9[%c0_109, %c0_110] : memref<2x128xf32, #tpu.memory_space<vmem>>, vector<2x128xf32>
      tpu.vector_store %arg9[%c0_109, %c0_110], %210 {strides = array<i32>} : memref<2x128xf32, #tpu.memory_space<vmem>>, vector<2x128xf32>,
      %c0_111 = arith.constant 0 : index
      %c0_112 = arith.constant 0 : index
      %212 = vector.load %arg5[%c0_111, %c0_112] : memref<2x128xf32, #tpu.memory_space<vmem>>, vector<2x128xf32>
      %c0_113 = arith.constant 0 : index
      %c0_114 = arith.constant 0 : index
      %213 = vector.load %arg10[%c0_113, %c0_114] : memref<2x128xf32, #tpu.memory_space<vmem>>, vector<2x128xf32>
      tpu.vector_store %arg10[%c0_113, %c0_114], %212 {strides = array<i32>} : memref<2x128xf32, #tpu.memory_space<vmem>>, vector<2x128xf32>,
    } else {
    }
    %c0 = arith.constant 0 : index
    %c0_1 = arith.constant 0 : index
    %3 = vector.load %arg9[%c0, %c0_1] : memref<2x128xf32, #tpu.memory_space<vmem>>, vector<2x128xf32>
    %c0_2 = arith.constant 0 : index
    %c0_3 = arith.constant 0 : index
    %4 = vector.load %arg10[%c0_2, %c0_3] : memref<2x128xf32, #tpu.memory_space<vmem>>, vector<2x128xf32>
    %c0_i32_4 = arith.constant 0 : i32
    %5 = arith.index_cast %c0_i32_4 : i32 to index
    %c0_5 = arith.constant 0 : index
    %c0_6 = arith.constant 0 : index
    %6 = vector.load %arg2[%5, %c0_5, %c0_6] : memref<4x2x512xf32, #tpu.memory_space<vmem>>, vector<1x2x512xf32>
    %7 = vector.shape_cast %6 : vector<1x2x512xf32> to vector<2x512xf32>
    %c0_7 = arith.constant 0 : index
    %c0_8 = arith.constant 0 : index
    %8 = vector.load %arg3[%c0_7, %c0_8] : memref<128x512xf32, #tpu.memory_space<vmem>>, vector<128x128xf32>
    %cst = arith.constant dense<0.000000e+00> : vector<2x128xf32>
    %9 = tpu.matmul %3, %8, %cst {dimension_numbers = #tpu.dot_dimension_numbers<[1], [0], [0], [1], [0, 0, 1, 1], [], []>} : vector<2x128xf32>, vector<128x128xf32>, vector<2x128xf32> -> vector<2x128xf32>
    %10 = vector.extract_strided_slice %7 {offsets = [0, 0], sizes = [2, 128], strides = [1, 1]} : vector<2x512xf32> to vector<2x128xf32>
    %11 = arith.addf %9, %10 : vector<2x128xf32>
    %cst_9 = arith.constant 5.000000e-01 : f32
    %12 = vector.broadcast %cst_9 : f32 to vector<2x128xf32>
    %13 = arith.mulf %12, %11 : vector<2x128xf32>
    %14 = math.tanh %13 : vector<2x128xf32>
    %cst_10 = arith.constant 5.000000e-01 : f32
    %15 = vector.broadcast %cst_10 : f32 to vector<2x128xf32>
    %16 = arith.mulf %15, %14 : vector<2x128xf32>
    %cst_11 = arith.constant 5.000000e-01 : f32
    %17 = vector.broadcast %cst_11 : f32 to vector<2x128xf32>
    %18 = arith.addf %16, %17 : vector<2x128xf32>
    %c0_12 = arith.constant 0 : index
    %c128 = arith.constant 128 : index
    %19 = vector.load %arg3[%c0_12, %c128] : memref<128x512xf32, #tpu.memory_space<vmem>>, vector<128x128xf32>
    %cst_13 = arith.constant dense<0.000000e+00> : vector<2x128xf32>
    %20 = tpu.matmul %3, %19, %cst_13 {dimension_numbers = #tpu.dot_dimension_numbers<[1], [0], [0], [1], [0, 0, 1, 1], [], []>} : vector<2x128xf32>, vector<128x128xf32>, vector<2x128xf32> -> vector<2x128xf32>
    %21 = vector.extract_strided_slice %7 {offsets = [0, 128], sizes = [2, 128], strides = [1, 1]} : vector<2x512xf32> to vector<2x128xf32>
    %22 = arith.addf %20, %21 : vector<2x128xf32>
    %cst_14 = arith.constant 5.000000e-01 : f32
    %23 = vector.broadcast %cst_14 : f32 to vector<2x128xf32>
    %24 = arith.mulf %23, %22 : vector<2x128xf32>
    %25 = math.tanh %24 : vector<2x128xf32>
    %cst_15 = arith.constant 5.000000e-01 : f32
    %26 = vector.broadcast %cst_15 : f32 to vector<2x128xf32>
    %27 = arith.mulf %26, %25 : vector<2x128xf32>
    %cst_16 = arith.constant 5.000000e-01 : f32
    %28 = vector.broadcast %cst_16 : f32 to vector<2x128xf32>
    %29 = arith.addf %27, %28 : vector<2x128xf32>
    %c0_17 = arith.constant 0 : index
    %c256 = arith.constant 256 : index
    %30 = vector.load %arg3[%c0_17, %c256] : memref<128x512xf32, #tpu.memory_space<vmem>>, vector<128x128xf32>
    %cst_18 = arith.constant dense<0.000000e+00> : vector<2x128xf32>
    %31 = tpu.matmul %3, %30, %cst_18 {dimension_numbers = #tpu.dot_dimension_numbers<[1], [0], [0], [1], [0, 0, 1, 1], [], []>} : vector<2x128xf32>, vector<128x128xf32>, vector<2x128xf32> -> vector<2x128xf32>
    %32 = vector.extract_strided_slice %7 {offsets = [0, 256], sizes = [2, 128], strides = [1, 1]} : vector<2x512xf32> to vector<2x128xf32>
    %33 = arith.addf %31, %32 : vector<2x128xf32>
    %34 = math.tanh %33 : vector<2x128xf32>
    %c0_19 = arith.constant 0 : index
    %c384 = arith.constant 384 : index
    %35 = vector.load %arg3[%c0_19, %c384] : memref<128x512xf32, #tpu.memory_space<vmem>>, vector<128x128xf32>
    %cst_20 = arith.constant dense<0.000000e+00> : vector<2x128xf32>
    %36 = tpu.matmul %3, %35, %cst_20 {dimension_numbers = #tpu.dot_dimension_numbers<[1], [0], [0], [1], [0, 0, 1, 1], [], []>} : vector<2x128xf32>, vector<128x128xf32>, vector<2x128xf32> -> vector<2x128xf32>
    %37 = vector.extract_strided_slice %7 {offsets = [0, 384], sizes = [2, 128], strides = [1, 1]} : vector<2x512xf32> to vector<2x128xf32>
    %38 = arith.addf %36, %37 : vector<2x128xf32>
    %cst_21 = arith.constant 5.000000e-01 : f32
    %39 = vector.broadcast %cst_21 : f32 to vector<2x128xf32>
    %40 = arith.mulf %39, %38 : vector<2x128xf32>
    %41 = math.tanh %40 : vector<2x128xf32>
    %cst_22 = arith.constant 5.000000e-01 : f32
    %42 = vector.broadcast %cst_22 : f32 to vector<2x128xf32>
    %43 = arith.mulf %42, %41 : vector<2x128xf32>
    %cst_23 = arith.constant 5.000000e-01 : f32
    %44 = vector.broadcast %cst_23 : f32 to vector<2x128xf32>
    %45 = arith.addf %43, %44 : vector<2x128xf32>
    %46 = arith.mulf %29, %4 : vector<2x128xf32>
    %47 = arith.mulf %18, %34 : vector<2x128xf32>
    %48 = arith.addf %46, %47 : vector<2x128xf32>
    %49 = math.tanh %48 : vector<2x128xf32>
    %50 = arith.mulf %45, %49 : vector<2x128xf32>
    %51 = arith.index_cast %c0_i32_4 : i32 to index
    %c0_24 = arith.constant 0 : index
    %c0_25 = arith.constant 0 : index
    %52 = vector.load %arg6[%51, %c0_24, %c0_25] : memref<4x2x128xf32, #tpu.memory_space<vmem>>, vector<1x2x128xf32>
    %53 = vector.shape_cast %52 : vector<1x2x128xf32> to vector<2x128xf32>
    %54 = vector.shape_cast %50 : vector<2x128xf32> to vector<1x2x128xf32>
    tpu.vector_store %arg6[%51, %c0_24, %c0_25], %54 {strides = array<i32>} : memref<4x2x128xf32, #tpu.memory_space<vmem>>, vector<1x2x128xf32>,
    %c1_i32 = arith.constant 1 : i32
    %55 = arith.index_cast %c1_i32 : i32 to index
    %c0_26 = arith.constant 0 : index
    %c0_27 = arith.constant 0 : index
    %56 = vector.load %arg2[%55, %c0_26, %c0_27] : memref<4x2x512xf32, #tpu.memory_space<vmem>>, vector<1x2x512xf32>
    %57 = vector.shape_cast %56 : vector<1x2x512xf32> to vector<2x512xf32>
    %c0_28 = arith.constant 0 : index
    %c0_29 = arith.constant 0 : index
    %58 = vector.load %arg3[%c0_28, %c0_29] : memref<128x512xf32, #tpu.memory_space<vmem>>, vector<128x128xf32>
    %cst_30 = arith.constant dense<0.000000e+00> : vector<2x128xf32>
    %59 = tpu.matmul %50, %58, %cst_30 {dimension_numbers = #tpu.dot_dimension_numbers<[1], [0], [0], [1], [0, 0, 1, 1], [], []>} : vector<2x128xf32>, vector<128x128xf32>, vector<2x128xf32> -> vector<2x128xf32>
    %60 = vector.extract_strided_slice %57 {offsets = [0, 0], sizes = [2, 128], strides = [1, 1]} : vector<2x512xf32> to vector<2x128xf32>
    %61 = arith.addf %59, %60 : vector<2x128xf32>
    %cst_31 = arith.constant 5.000000e-01 : f32
    %62 = vector.broadcast %cst_31 : f32 to vector<2x128xf32>
    %63 = arith.mulf %62, %61 : vector<2x128xf32>
    %64 = math.tanh %63 : vector<2x128xf32>
    %cst_32 = arith.constant 5.000000e-01 : f32
    %65 = vector.broadcast %cst_32 : f32 to vector<2x128xf32>
    %66 = arith.mulf %65, %64 : vector<2x128xf32>
    %cst_33 = arith.constant 5.000000e-01 : f32
    %67 = vector.broadcast %cst_33 : f32 to vector<2x128xf32>
    %68 = arith.addf %66, %67 : vector<2x128xf32>
    %c0_34 = arith.constant 0 : index
    %c128_35 = arith.constant 128 : index
    %69 = vector.load %arg3[%c0_34, %c128_35] : memref<128x512xf32, #tpu.memory_space<vmem>>, vector<128x128xf32>
    %cst_36 = arith.constant dense<0.000000e+00> : vector<2x128xf32>
    %70 = tpu.matmul %50, %69, %cst_36 {dimension_numbers = #tpu.dot_dimension_numbers<[1], [0], [0], [1], [0, 0, 1, 1], [], []>} : vector<2x128xf32>, vector<128x128xf32>, vector<2x128xf32> -> vector<2x128xf32>
    %71 = vector.extract_strided_slice %57 {offsets = [0, 128], sizes = [2, 128], strides = [1, 1]} : vector<2x512xf32> to vector<2x128xf32>
    %72 = arith.addf %70, %71 : vector<2x128xf32>
    %cst_37 = arith.constant 5.000000e-01 : f32
    %73 = vector.broadcast %cst_37 : f32 to vector<2x128xf32>
    %74 = arith.mulf %73, %72 : vector<2x128xf32>
    %75 = math.tanh %74 : vector<2x128xf32>
    %cst_38 = arith.constant 5.000000e-01 : f32
    %76 = vector.broadcast %cst_38 : f32 to vector<2x128xf32>
    %77 = arith.mulf %76, %75 : vector<2x128xf32>
    %cst_39 = arith.constant 5.000000e-01 : f32
    %78 = vector.broadcast %cst_39 : f32 to vector<2x128xf32>
    %79 = arith.addf %77, %78 : vector<2x128xf32>
    %c0_40 = arith.constant 0 : index
    %c256_41 = arith.constant 256 : index
    %80 = vector.load %arg3[%c0_40, %c256_41] : memref<128x512xf32, #tpu.memory_space<vmem>>, vector<128x128xf32>
    %cst_42 = arith.constant dense<0.000000e+00> : vector<2x128xf32>
    %81 = tpu.matmul %50, %80, %cst_42 {dimension_numbers = #tpu.dot_dimension_numbers<[1], [0], [0], [1], [0, 0, 1, 1], [], []>} : vector<2x128xf32>, vector<128x128xf32>, vector<2x128xf32> -> vector<2x128xf32>
    %82 = vector.extract_strided_slice %57 {offsets = [0, 256], sizes = [2, 128], strides = [1, 1]} : vector<2x512xf32> to vector<2x128xf32>
    %83 = arith.addf %81, %82 : vector<2x128xf32>
    %84 = math.tanh %83 : vector<2x128xf32>
    %c0_43 = arith.constant 0 : index
    %c384_44 = arith.constant 384 : index
    %85 = vector.load %arg3[%c0_43, %c384_44] : memref<128x512xf32, #tpu.memory_space<vmem>>, vector<128x128xf32>
    %cst_45 = arith.constant dense<0.000000e+00> : vector<2x128xf32>
    %86 = tpu.matmul %50, %85, %cst_45 {dimension_numbers = #tpu.dot_dimension_numbers<[1], [0], [0], [1], [0, 0, 1, 1], [], []>} : vector<2x128xf32>, vector<128x128xf32>, vector<2x128xf32> -> vector<2x128xf32>
    %87 = vector.extract_strided_slice %57 {offsets = [0, 384], sizes = [2, 128], strides = [1, 1]} : vector<2x512xf32> to vector<2x128xf32>
    %88 = arith.addf %86, %87 : vector<2x128xf32>
    %cst_46 = arith.constant 5.000000e-01 : f32
    %89 = vector.broadcast %cst_46 : f32 to vector<2x128xf32>
    %90 = arith.mulf %89, %88 : vector<2x128xf32>
    %91 = math.tanh %90 : vector<2x128xf32>
    %cst_47 = arith.constant 5.000000e-01 : f32
    %92 = vector.broadcast %cst_47 : f32 to vector<2x128xf32>
    %93 = arith.mulf %92, %91 : vector<2x128xf32>
    %cst_48 = arith.constant 5.000000e-01 : f32
    %94 = vector.broadcast %cst_48 : f32 to vector<2x128xf32>
    %95 = arith.addf %93, %94 : vector<2x128xf32>
    %96 = arith.mulf %79, %48 : vector<2x128xf32>
    %97 = arith.mulf %68, %84 : vector<2x128xf32>
    %98 = arith.addf %96, %97 : vector<2x128xf32>
    %99 = math.tanh %98 : vector<2x128xf32>
    %100 = arith.mulf %95, %99 : vector<2x128xf32>
    %101 = arith.index_cast %c1_i32 : i32 to index
    %c0_49 = arith.constant 0 : index
    %c0_50 = arith.constant 0 : index
    %102 = vector.load %arg6[%101, %c0_49, %c0_50] : memref<4x2x128xf32, #tpu.memory_space<vmem>>, vector<1x2x128xf32>
    %103 = vector.shape_cast %102 : vector<1x2x128xf32> to vector<2x128xf32>
    %104 = vector.shape_cast %100 : vector<2x128xf32> to vector<1x2x128xf32>
    tpu.vector_store %arg6[%101, %c0_49, %c0_50], %104 {strides = array<i32>} : memref<4x2x128xf32, #tpu.memory_space<vmem>>, vector<1x2x128xf32>,
    %c2_i32 = arith.constant 2 : i32
    %105 = arith.index_cast %c2_i32 : i32 to index
    %c0_51 = arith.constant 0 : index
    %c0_52 = arith.constant 0 : index
    %106 = vector.load %arg2[%105, %c0_51, %c0_52] : memref<4x2x512xf32, #tpu.memory_space<vmem>>, vector<1x2x512xf32>
    %107 = vector.shape_cast %106 : vector<1x2x512xf32> to vector<2x512xf32>
    %c0_53 = arith.constant 0 : index
    %c0_54 = arith.constant 0 : index
    %108 = vector.load %arg3[%c0_53, %c0_54] : memref<128x512xf32, #tpu.memory_space<vmem>>, vector<128x128xf32>
    %cst_55 = arith.constant dense<0.000000e+00> : vector<2x128xf32>
    %109 = tpu.matmul %100, %108, %cst_55 {dimension_numbers = #tpu.dot_dimension_numbers<[1], [0], [0], [1], [0, 0, 1, 1], [], []>} : vector<2x128xf32>, vector<128x128xf32>, vector<2x128xf32> -> vector<2x128xf32>
    %110 = vector.extract_strided_slice %107 {offsets = [0, 0], sizes = [2, 128], strides = [1, 1]} : vector<2x512xf32> to vector<2x128xf32>
    %111 = arith.addf %109, %110 : vector<2x128xf32>
    %cst_56 = arith.constant 5.000000e-01 : f32
    %112 = vector.broadcast %cst_56 : f32 to vector<2x128xf32>
    %113 = arith.mulf %112, %111 : vector<2x128xf32>
    %114 = math.tanh %113 : vector<2x128xf32>
    %cst_57 = arith.constant 5.000000e-01 : f32
    %115 = vector.broadcast %cst_57 : f32 to vector<2x128xf32>
    %116 = arith.mulf %115, %114 : vector<2x128xf32>
    %cst_58 = arith.constant 5.000000e-01 : f32
    %117 = vector.broadcast %cst_58 : f32 to vector<2x128xf32>
    %118 = arith.addf %116, %117 : vector<2x128xf32>
    %c0_59 = arith.constant 0 : index
    %c128_60 = arith.constant 128 : index
    %119 = vector.load %arg3[%c0_59, %c128_60] : memref<128x512xf32, #tpu.memory_space<vmem>>, vector<128x128xf32>
    %cst_61 = arith.constant dense<0.000000e+00> : vector<2x128xf32>
    %120 = tpu.matmul %100, %119, %cst_61 {dimension_numbers = #tpu.dot_dimension_numbers<[1], [0], [0], [1], [0, 0, 1, 1], [], []>} : vector<2x128xf32>, vector<128x128xf32>, vector<2x128xf32> -> vector<2x128xf32>
    %121 = vector.extract_strided_slice %107 {offsets = [0, 128], sizes = [2, 128], strides = [1, 1]} : vector<2x512xf32> to vector<2x128xf32>
    %122 = arith.addf %120, %121 : vector<2x128xf32>
    %cst_62 = arith.constant 5.000000e-01 : f32
    %123 = vector.broadcast %cst_62 : f32 to vector<2x128xf32>
    %124 = arith.mulf %123, %122 : vector<2x128xf32>
    %125 = math.tanh %124 : vector<2x128xf32>
    %cst_63 = arith.constant 5.000000e-01 : f32
    %126 = vector.broadcast %cst_63 : f32 to vector<2x128xf32>
    %127 = arith.mulf %126, %125 : vector<2x128xf32>
    %cst_64 = arith.constant 5.000000e-01 : f32
    %128 = vector.broadcast %cst_64 : f32 to vector<2x128xf32>
    %129 = arith.addf %127, %128 : vector<2x128xf32>
    %c0_65 = arith.constant 0 : index
    %c256_66 = arith.constant 256 : index
    %130 = vector.load %arg3[%c0_65, %c256_66] : memref<128x512xf32, #tpu.memory_space<vmem>>, vector<128x128xf32>
    %cst_67 = arith.constant dense<0.000000e+00> : vector<2x128xf32>
    %131 = tpu.matmul %100, %130, %cst_67 {dimension_numbers = #tpu.dot_dimension_numbers<[1], [0], [0], [1], [0, 0, 1, 1], [], []>} : vector<2x128xf32>, vector<128x128xf32>, vector<2x128xf32> -> vector<2x128xf32>
    %132 = vector.extract_strided_slice %107 {offsets = [0, 256], sizes = [2, 128], strides = [1, 1]} : vector<2x512xf32> to vector<2x128xf32>
    %133 = arith.addf %131, %132 : vector<2x128xf32>
    %134 = math.tanh %133 : vector<2x128xf32>
    %c0_68 = arith.constant 0 : index
    %c384_69 = arith.constant 384 : index
    %135 = vector.load %arg3[%c0_68, %c384_69] : memref<128x512xf32, #tpu.memory_space<vmem>>, vector<128x128xf32>
    %cst_70 = arith.constant dense<0.000000e+00> : vector<2x128xf32>
    %136 = tpu.matmul %100, %135, %cst_70 {dimension_numbers = #tpu.dot_dimension_numbers<[1], [0], [0], [1], [0, 0, 1, 1], [], []>} : vector<2x128xf32>, vector<128x128xf32>, vector<2x128xf32> -> vector<2x128xf32>
    %137 = vector.extract_strided_slice %107 {offsets = [0, 384], sizes = [2, 128], strides = [1, 1]} : vector<2x512xf32> to vector<2x128xf32>
    %138 = arith.addf %136, %137 : vector<2x128xf32>
    %cst_71 = arith.constant 5.000000e-01 : f32
    %139 = vector.broadcast %cst_71 : f32 to vector<2x128xf32>
    %140 = arith.mulf %139, %138 : vector<2x128xf32>
    %141 = math.tanh %140 : vector<2x128xf32>
    %cst_72 = arith.constant 5.000000e-01 : f32
    %142 = vector.broadcast %cst_72 : f32 to vector<2x128xf32>
    %143 = arith.mulf %142, %141 : vector<2x128xf32>
    %cst_73 = arith.constant 5.000000e-01 : f32
    %144 = vector.broadcast %cst_73 : f32 to vector<2x128xf32>
    %145 = arith.addf %143, %144 : vector<2x128xf32>
    %146 = arith.mulf %129, %98 : vector<2x128xf32>
    %147 = arith.mulf %118, %134 : vector<2x128xf32>
    %148 = arith.addf %146, %147 : vector<2x128xf32>
    %149 = math.tanh %148 : vector<2x128xf32>
    %150 = arith.mulf %145, %149 : vector<2x128xf32>
    %151 = arith.index_cast %c2_i32 : i32 to index
    %c0_74 = arith.constant 0 : index
    %c0_75 = arith.constant 0 : index
    %152 = vector.load %arg6[%151, %c0_74, %c0_75] : memref<4x2x128xf32, #tpu.memory_space<vmem>>, vector<1x2x128xf32>
    %153 = vector.shape_cast %152 : vector<1x2x128xf32> to vector<2x128xf32>
    %154 = vector.shape_cast %150 : vector<2x128xf32> to vector<1x2x128xf32>
    tpu.vector_store %arg6[%151, %c0_74, %c0_75], %154 {strides = array<i32>} : memref<4x2x128xf32, #tpu.memory_space<vmem>>, vector<1x2x128xf32>,
    %c3_i32 = arith.constant 3 : i32
    %155 = arith.index_cast %c3_i32 : i32 to index
    %c0_76 = arith.constant 0 : index
    %c0_77 = arith.constant 0 : index
    %156 = vector.load %arg2[%155, %c0_76, %c0_77] : memref<4x2x512xf32, #tpu.memory_space<vmem>>, vector<1x2x512xf32>
    %157 = vector.shape_cast %156 : vector<1x2x512xf32> to vector<2x512xf32>
    %c0_78 = arith.constant 0 : index
    %c0_79 = arith.constant 0 : index
    %158 = vector.load %arg3[%c0_78, %c0_79] : memref<128x512xf32, #tpu.memory_space<vmem>>, vector<128x128xf32>
    %cst_80 = arith.constant dense<0.000000e+00> : vector<2x128xf32>
    %159 = tpu.matmul %150, %158, %cst_80 {dimension_numbers = #tpu.dot_dimension_numbers<[1], [0], [0], [1], [0, 0, 1, 1], [], []>} : vector<2x128xf32>, vector<128x128xf32>, vector<2x128xf32> -> vector<2x128xf32>
    %160 = vector.extract_strided_slice %157 {offsets = [0, 0], sizes = [2, 128], strides = [1, 1]} : vector<2x512xf32> to vector<2x128xf32>
    %161 = arith.addf %159, %160 : vector<2x128xf32>
    %cst_81 = arith.constant 5.000000e-01 : f32
    %162 = vector.broadcast %cst_81 : f32 to vector<2x128xf32>
    %163 = arith.mulf %162, %161 : vector<2x128xf32>
    %164 = math.tanh %163 : vector<2x128xf32>
    %cst_82 = arith.constant 5.000000e-01 : f32
    %165 = vector.broadcast %cst_82 : f32 to vector<2x128xf32>
    %166 = arith.mulf %165, %164 : vector<2x128xf32>
    %cst_83 = arith.constant 5.000000e-01 : f32
    %167 = vector.broadcast %cst_83 : f32 to vector<2x128xf32>
    %168 = arith.addf %166, %167 : vector<2x128xf32>
    %c0_84 = arith.constant 0 : index
    %c128_85 = arith.constant 128 : index
    %169 = vector.load %arg3[%c0_84, %c128_85] : memref<128x512xf32, #tpu.memory_space<vmem>>, vector<128x128xf32>
    %cst_86 = arith.constant dense<0.000000e+00> : vector<2x128xf32>
    %170 = tpu.matmul %150, %169, %cst_86 {dimension_numbers = #tpu.dot_dimension_numbers<[1], [0], [0], [1], [0, 0, 1, 1], [], []>} : vector<2x128xf32>, vector<128x128xf32>, vector<2x128xf32> -> vector<2x128xf32>
    %171 = vector.extract_strided_slice %157 {offsets = [0, 128], sizes = [2, 128], strides = [1, 1]} : vector<2x512xf32> to vector<2x128xf32>
    %172 = arith.addf %170, %171 : vector<2x128xf32>
    %cst_87 = arith.constant 5.000000e-01 : f32
    %173 = vector.broadcast %cst_87 : f32 to vector<2x128xf32>
    %174 = arith.mulf %173, %172 : vector<2x128xf32>
    %175 = math.tanh %174 : vector<2x128xf32>
    %cst_88 = arith.constant 5.000000e-01 : f32
    %176 = vector.broadcast %cst_88 : f32 to vector<2x128xf32>
    %177 = arith.mulf %176, %175 : vector<2x128xf32>
    %cst_89 = arith.constant 5.000000e-01 : f32
    %178 = vector.broadcast %cst_89 : f32 to vector<2x128xf32>
    %179 = arith.addf %177, %178 : vector<2x128xf32>
    %c0_90 = arith.constant 0 : index
    %c256_91 = arith.constant 256 : index
    %180 = vector.load %arg3[%c0_90, %c256_91] : memref<128x512xf32, #tpu.memory_space<vmem>>, vector<128x128xf32>
    %cst_92 = arith.constant dense<0.000000e+00> : vector<2x128xf32>
    %181 = tpu.matmul %150, %180, %cst_92 {dimension_numbers = #tpu.dot_dimension_numbers<[1], [0], [0], [1], [0, 0, 1, 1], [], []>} : vector<2x128xf32>, vector<128x128xf32>, vector<2x128xf32> -> vector<2x128xf32>
    %182 = vector.extract_strided_slice %157 {offsets = [0, 256], sizes = [2, 128], strides = [1, 1]} : vector<2x512xf32> to vector<2x128xf32>
    %183 = arith.addf %181, %182 : vector<2x128xf32>
    %184 = math.tanh %183 : vector<2x128xf32>
    %c0_93 = arith.constant 0 : index
    %c384_94 = arith.constant 384 : index
    %185 = vector.load %arg3[%c0_93, %c384_94] : memref<128x512xf32, #tpu.memory_space<vmem>>, vector<128x128xf32>
    %cst_95 = arith.constant dense<0.000000e+00> : vector<2x128xf32>
    %186 = tpu.matmul %150, %185, %cst_95 {dimension_numbers = #tpu.dot_dimension_numbers<[1], [0], [0], [1], [0, 0, 1, 1], [], []>} : vector<2x128xf32>, vector<128x128xf32>, vector<2x128xf32> -> vector<2x128xf32>
    %187 = vector.extract_strided_slice %157 {offsets = [0, 384], sizes = [2, 128], strides = [1, 1]} : vector<2x512xf32> to vector<2x128xf32>
    %188 = arith.addf %186, %187 : vector<2x128xf32>
    %cst_96 = arith.constant 5.000000e-01 : f32
    %189 = vector.broadcast %cst_96 : f32 to vector<2x128xf32>
    %190 = arith.mulf %189, %188 : vector<2x128xf32>
    %191 = math.tanh %190 : vector<2x128xf32>
    %cst_97 = arith.constant 5.000000e-01 : f32
    %192 = vector.broadcast %cst_97 : f32 to vector<2x128xf32>
    %193 = arith.mulf %192, %191 : vector<2x128xf32>
    %cst_98 = arith.constant 5.000000e-01 : f32
    %194 = vector.broadcast %cst_98 : f32 to vector<2x128xf32>
    %195 = arith.addf %193, %194 : vector<2x128xf32>
    %196 = arith.mulf %179, %148 : vector<2x128xf32>
    %197 = arith.mulf %168, %184 : vector<2x128xf32>
    %198 = arith.addf %196, %197 : vector<2x128xf32>
    %199 = math.tanh %198 : vector<2x128xf32>
    %200 = arith.mulf %195, %199 : vector<2x128xf32>
    %201 = arith.index_cast %c3_i32 : i32 to index
    %c0_99 = arith.constant 0 : index
    %c0_100 = arith.constant 0 : index
    %202 = vector.load %arg6[%201, %c0_99, %c0_100] : memref<4x2x128xf32, #tpu.memory_space<vmem>>, vector<1x2x128xf32>
    %203 = vector.shape_cast %202 : vector<1x2x128xf32> to vector<2x128xf32>
    %204 = vector.shape_cast %200 : vector<2x128xf32> to vector<1x2x128xf32>
    tpu.vector_store %arg6[%201, %c0_99, %c0_100], %204 {strides = array<i32>} : memref<4x2x128xf32, #tpu.memory_space<vmem>>, vector<1x2x128xf32>,
    %c4_i32 = arith.constant 4 : i32
    %c0_101 = arith.constant 0 : index
    %c0_102 = arith.constant 0 : index
    %205 = vector.load %arg9[%c0_101, %c0_102] : memref<2x128xf32, #tpu.memory_space<vmem>>, vector<2x128xf32>
    tpu.vector_store %arg9[%c0_101, %c0_102], %200 {strides = array<i32>} : memref<2x128xf32, #tpu.memory_space<vmem>>, vector<2x128xf32>,
    %c0_103 = arith.constant 0 : index
    %c0_104 = arith.constant 0 : index
    %206 = vector.load %arg10[%c0_103, %c0_104] : memref<2x128xf32, #tpu.memory_space<vmem>>, vector<2x128xf32>
    tpu.vector_store %arg10[%c0_103, %c0_104], %198 {strides = array<i32>} : memref<2x128xf32, #tpu.memory_space<vmem>>, vector<2x128xf32>,
    %c0_i32_105 = arith.constant 0 : i32
    %207 = arith.cmpi eq, %arg1, %c0_i32_105 : i32
    %208 = arith.extui %207 : i1 to i32
    %c0_i32_106 = arith.constant 0 : i32
    %209 = arith.cmpi ne, %208, %c0_i32_106 : i32
    scf.if %209 {
      %c0_107 = arith.constant 0 : index
      %c0_108 = arith.constant 0 : index
      %210 = vector.load %arg7[%c0_107, %c0_108] : memref<2x128xf32, #tpu.memory_space<vmem>>, vector<2x128xf32>
      tpu.vector_store %arg7[%c0_107, %c0_108], %200 {strides = array<i32>} : memref<2x128xf32, #tpu.memory_space<vmem>>, vector<2x128xf32>,
      %c0_109 = arith.constant 0 : index
      %c0_110 = arith.constant 0 : index
      %211 = vector.load %arg8[%c0_109, %c0_110] : memref<2x128xf32, #tpu.memory_space<vmem>>, vector<2x128xf32>
      tpu.vector_store %arg8[%c0_109, %c0_110], %198 {strides = array<i32>} : memref<2x128xf32, #tpu.memory_space<vmem>>, vector<2x128xf32>,
    } else {
    }
    return
  }
  func.func @transform_0(%arg0: i32, %arg1: i32) -> (i32, i32, i32) {
    %c0_i32 = arith.constant 0 : i32
    %c0_i32_0 = arith.constant 0 : i32
    return %arg1, %arg0, %c0_i32 : i32, i32, i32
  }
  func.func @transform_1(%arg0: i32, %arg1: i32) -> (i32, i32) {
    %c0_i32 = arith.constant 0 : i32
    %c0_i32_0 = arith.constant 0 : i32
    %c0_i32_1 = arith.constant 0 : i32
    return %c0_i32, %c0_i32_0 : i32, i32
  }
  func.func @transform_2(%arg0: i32, %arg1: i32) -> (i32, i32) {
    %c0_i32 = arith.constant 0 : i32
    %c0_i32_0 = arith.constant 0 : i32
    return %arg0, %c0_i32 : i32, i32
  }
  func.func @transform_3(%arg0: i32, %arg1: i32) -> (i32, i32) {
    %c0_i32 = arith.constant 0 : i32
    %c0_i32_0 = arith.constant 0 : i32
    return %arg0, %c0_i32 : i32, i32
  }
  func.func @transform_4(%arg0: i32, %arg1: i32) -> (i32, i32, i32) {
    %c0_i32 = arith.constant 0 : i32
    %c0_i32_0 = arith.constant 0 : i32
    return %arg1, %arg0, %c0_i32 : i32, i32, i32
  }
  func.func @transform_5(%arg0: i32, %arg1: i32) -> (i32, i32) {
    %c0_i32 = arith.constant 0 : i32
    %c0_i32_0 = arith.constant 0 : i32
    return %arg0, %c0_i32 : i32, i32
  }
  func.func @transform_6(%arg0: i32, %arg1: i32) -> (i32, i32) {
    %c0_i32 = arith.constant 0 : i32
    %c0_i32_0 = arith.constant 0 : i32
    return %arg0, %c0_i32 : i32, i32
  }
}

</mosaic_0001>

<llo_original>
// kernel: tpu_custom_call.1
$region0: #{tpu_custom_call.1}
  #allocation0 [shape = 'u32[]', space=smem, size = 0x4, offset = 0x4, fixed_abs, tag = 'smem constant byte address 0x4 - core index']
  #allocation1 [shape = 'u32[144,128]{1,0:T(1,128)}', space=vmem, size = 0x12000, scoped, tag = 'internal scratch']
  #allocation2 [shape = 'f32[2,128]{1,0:T(2,128)}', space=vmem, size = 0x400, scoped, tag = 'scratch operand']
  #allocation3 [shape = 'f32[2,128]{1,0:T(2,128)}', space=vmem, size = 0x400, scoped, tag = 'scratch operand']
  %s0 = inlined_call_operand.hbm [shape: f32[4,2,512], index: 0, kind: input, shape index: {}]
  %s1 = inlined_call_operand.hbm [shape: f32[128,512], index: 1, kind: input, shape index: {}]
  %s2 = inlined_call_operand.hbm [shape: f32[2,128], index: 2, kind: input, shape index: {}, may-alias: {2,5}]
  %s3 = inlined_call_operand.hbm [shape: f32[2,128], index: 3, kind: input, shape index: {}, may-alias: {3,6}]
  %s4 = inlined_call_operand.hbm [shape: f32[4,2,128], index: 4, kind: output, shape index: {0}]
  %s5 = inlined_call_operand.hbm [shape: f32[2,128], index: 5, kind: output, shape index: {1}, may-alias: {2,5}]
  %s6 = inlined_call_operand.hbm [shape: f32[2,128], index: 6, kind: output, shape index: {2}, may-alias: {3,6}]
  %7 = xla_tuple %s4, %s5, %s6
  %s8 = sld [smem:[#allocation0]]
  $region66: #{tpu_custom_call.1} parent=0
    _
  %s10 = ssub.s32 1, %s8
  %s11 = scalar_select 0, %s10, %s8
  $region1: #{tpu_custom_call.1} parent=0
    #allocation4 [shape = 'u8[16384]{0}', space=vmem, size = 0x4000, scoped, tag = 'input window, operand 0, single buffered']
    #allocation5 [shape = 's32[1]{0}', space=sflag, size = 0x4, scoped, tag = 'scoped memory for tpu_custom_call.1']
    #allocation6 [shape = 's32[1]{0}', space=sflag, size = 0x4, scoped, tag = 'scoped memory for tpu_custom_call.1']
    #allocation7 [shape = 'u8[262144]{0}', space=vmem, size = 0x40000, scoped, tag = 'input window, operand 1, single buffered']
    #allocation8 [shape = 's32[1]{0}', space=sflag, size = 0x4, scoped, tag = 'scoped memory for tpu_custom_call.1']
    #allocation9 [shape = 'u8[1024]{0}', space=vmem, size = 0x400, scoped, tag = 'input window, operand 2, single buffered']
    #allocation10 [shape = 'u8[1024]{0}', space=vmem, size = 0x400, scoped, tag = 'input window, operand 3, single buffered']
    #allocation11 [shape = 's32[1]{0}', space=sflag, size = 0x4, scoped, tag = 'scoped memory for tpu_custom_call.1']
    #allocation12 [shape = 'u8[4096]{0}', space=vmem, size = 0x1000, scoped, tag = 'output window, operand 0, single buffered']
    #allocation13 [shape = 'u8[1024]{0}', space=vmem, size = 0x400, scoped, tag = 'output window, operand 1, single buffered']
    #allocation14 [shape = 's32[1]{0}', space=sflag, size = 0x4, scoped, tag = 'scoped memory for tpu_custom_call.1']
    #allocation15 [shape = 'u8[1024]{0}', space=vmem, size = 0x400, scoped, tag = 'output window, operand 2, single buffered']
    %12 = vsyncpa [#allocation5], 0
    %13 = vsyncpa [#allocation8], 0
    %14 = vsyncpa [#allocation11], 0
    %15 = vsyncpa [#allocation6], 0
    %16 = vsyncpa [#allocation14], 0
    // Predicated region
    $region2: #{tpu_custom_call.1} parent=1 // pred_check
      _
    $region3: #{tpu_custom_call.1} parent=1 // pred_check_branch
      %18 = sbr.rel (0) target = $region5
    $region4: #{tpu_custom_call.1} parent=1 // pred_region
      %s20 = ssub.s32 512, 512
      %21 = vsyncadd [#allocation5], %s20
      %s22 = sshll.u32 [#allocation4], 4
      %s23 = int_to_ptr.vmem [resolvable:$true] %s22
      %28 = dma.hbm_to_vmem [thread:$0]  %s0, 512, %s23, [#allocation5], 128, 128, 8
    $region5: #{tpu_custom_call.1} parent=1 // pred_fallthru
      _
    // Predicated region
    $region6: #{tpu_custom_call.1} parent=1 // pred_check
      _
    $region7: #{tpu_custom_call.1} parent=1 // pred_check_branch
      %30 = sbr.rel (0) target = $region9
    $region8: #{tpu_custom_call.1} parent=1 // pred_region
      %s32 = ssub.s32 8192, 8192
      %33 = vsyncadd [#allocation8], %s32
      %s34 = sshll.u32 [#allocation7], 4
      %s35 = int_to_ptr.vmem [resolvable:$true] %s34
      %40 = dma.hbm_to_vmem [thread:$0]  %s1, 8192, %s35, [#allocation8], 512, 512, 32
    $region9: #{tpu_custom_call.1} parent=1 // pred_fallthru
      _
    // Predicated region
    $region10: #{tpu_custom_call.1} parent=1 // pred_check
      _
    $region11: #{tpu_custom_call.1} parent=1 // pred_check_branch
      %42 = sbr.rel (0) target = $region13
    $region12: #{tpu_custom_call.1} parent=1 // pred_region
      %s44 = ssub.s32 32, 32
      %45 = vsyncadd [#allocation8], %s44
      %s47 = sshll.u32 [#allocation9], 4
      %s48 = int_to_ptr.vmem [resolvable:$true] %s47
      %50 = dma.hbm_to_vmem [thread:$0]  %s2, 32, %s48, [#allocation8]
    $region13: #{tpu_custom_call.1} parent=1 // pred_fallthru
      _
    // Predicated region
    $region14: #{tpu_custom_call.1} parent=1 // pred_check
      _
    $region15: #{tpu_custom_call.1} parent=1 // pred_check_branch
      %52 = sbr.rel (0) target = $region17
    $region16: #{tpu_custom_call.1} parent=1 // pred_region
      %s54 = ssub.s32 32, 32
      %55 = vsyncadd [#allocation11], %s54
      %s57 = sshll.u32 [#allocation10], 4
      %s58 = int_to_ptr.vmem [resolvable:$true] %s57
      %60 = dma.hbm_to_vmem [thread:$0]  %s3, 32, %s58, [#allocation11]
    $region17: #{tpu_custom_call.1} parent=1 // pred_fallthru
      _
    // Predicated region
    $region18: #{tpu_custom_call.1} parent=1 // pred_check
      _
    $region19: #{tpu_custom_call.1} parent=1 // pred_check_branch
      %62 = sbr.rel (0) target = $region21
    $region20: #{tpu_custom_call.1} parent=1 // pred_region
      %63 = dma.done [#allocation5], 512
    $region21: #{tpu_custom_call.1} parent=1 // pred_fallthru
      _
    // Predicated region
    $region22: #{tpu_custom_call.1} parent=1 // pred_check
      _
    $region23: #{tpu_custom_call.1} parent=1 // pred_check_branch
      %65 = sbr.rel (0) target = $region25
    $region24: #{tpu_custom_call.1} parent=1 // pred_region
      %66 = dma.done [#allocation8], 8192
    $region25: #{tpu_custom_call.1} parent=1 // pred_fallthru
      _
    // Predicated region
    $region26: #{tpu_custom_call.1} parent=1 // pred_check
      _
    $region27: #{tpu_custom_call.1} parent=1 // pred_check_branch
      %68 = sbr.rel (0) target = $region29
    $region28: #{tpu_custom_call.1} parent=1 // pred_region
      %69 = dma.done [#allocation8], 32
    $region29: #{tpu_custom_call.1} parent=1 // pred_fallthru
      _
    // Predicated region
    $region30: #{tpu_custom_call.1} parent=1 // pred_check
      _
    $region31: #{tpu_custom_call.1} parent=1 // pred_check_branch
      %71 = sbr.rel (0) target = $region33
    $region32: #{tpu_custom_call.1} parent=1 // pred_region
      %72 = dma.done [#allocation11], 32
    $region33: #{tpu_custom_call.1} parent=1 // pred_fallthru
      _
    %p73 = scmp.eq.s32.totalorder 0, 0
    // Predicated region
    $region34: #{tpu_custom_call.1} parent=1 // pred_check
      %p74 = pneg %p73
    $region35: #{tpu_custom_call.1} parent=1 // pred_check_branch
      %76 = sbr.rel (%p74) target = $region37
    $region36: #{tpu_custom_call.1} parent=1 // pred_region
      %v77 = vld [vmem:[#allocation9] sm:$0x3]
      %78 = vst [vmem:[#allocation2] sm:$0x3] %v77
      %v79 = vld [vmem:[#allocation10] sm:$0x3]
      %80 = vst [vmem:[#allocation3] sm:$0x3] %v79
    $region37: #{tpu_custom_call.1} parent=1 // pred_fallthru
      _
    %v81 = vld [vmem:[#allocation2] sm:$0x3]
    %v82 = vld [vmem:[#allocation3] sm:$0x3]
    %v83 = vld [vmem:[#allocation4] sm:$0xff]
    %v84 = vld [vmem:[#allocation7] sm:$0xff]
    %v85 = vld [vmem:[#allocation7 + $0x20] sm:$0xff]
    %v86 = vld [vmem:[#allocation7 + $0x40] sm:$0xff]
    %v87 = vld [vmem:[#allocation7 + $0x60] sm:$0xff]
    %v88 = vld [vmem:[#allocation7 + $0x80] sm:$0xff]
    %v89 = vld [vmem:[#allocation7 + $0xa0] sm:$0xff]
    %v90 = vld [vmem:[#allocation7 + $0xc0] sm:$0xff]
    %v91 = vld [vmem:[#allocation7 + $0xe0] sm:$0xff]
    %v92 = vld [vmem:[#allocation7 + $0x100] sm:$0xff]
    %v93 = vld [vmem:[#allocation7 + $0x120] sm:$0xff]
    %v94 = vld [vmem:[#allocation7 + $0x140] sm:$0xff]
    %v95 = vld [vmem:[#allocation7 + $0x160] sm:$0xff]
    %v96 = vld [vmem:[#allocation7 + $0x180] sm:$0xff]
    %v97 = vld [vmem:[#allocation7 + $0x1a0] sm:$0xff]
    %v98 = vld [vmem:[#allocation7 + $0x1c0] sm:$0xff]
    %v99 = vld [vmem:[#allocation7 + $0x1e0] sm:$0xff]
    %100 = vmatprep.subr.mxu0 0.0
    %101 = vmatpush1.msra.mxu0 %v84
    %102 = vmatprep.subr.mxu0 0.0
    %103 = vmatpush1.msra.mxu0 %v85
    %104 = vmatprep.subr.mxu0 0.0
    %105 = vmatpush1.msra.mxu0 %v86
    %106 = vmatprep.subr.mxu0 0.0
    %107 = vmatpush1.msra.mxu0 %v87
    %108 = vmatprep.subr.mxu0 0.0
    %109 = vmatpush1.msra.mxu0 %v88
    %110 = vmatprep.subr.mxu0 0.0
    %111 = vmatpush1.msra.mxu0 %v89
    %112 = vmatprep.subr.mxu0 0.0
    %113 = vmatpush1.msra.mxu0 %v90
    %114 = vmatprep.subr.mxu0 0.0
    %115 = vmatpush1.msra.mxu0 %v91
    %116 = vmatprep.subr.mxu0 0.0
    %117 = vmatpush1.msra.mxu0 %v92
    %118 = vmatprep.subr.mxu0 0.0
    %119 = vmatpush1.msra.mxu0 %v93
    %120 = vmatprep.subr.mxu0 0.0
    %121 = vmatpush1.msra.mxu0 %v94
    %122 = vmatprep.subr.mxu0 0.0
    %123 = vmatpush1.msra.mxu0 %v95
    %124 = vmatprep.subr.mxu0 0.0
    %125 = vmatpush1.msra.mxu0 %v96
    %126 = vmatprep.subr.mxu0 0.0
    %127 = vmatpush1.msra.mxu0 %v97
    %128 = vmatprep.subr.mxu0 0.0
    %129 = vmatpush1.msra.mxu0 %v98
    %130 = vmatprep.subr.mxu0 0.0
    %131 = vmatpush1.msra.mxu0 %v99
    %132 = vmatprep.subr.mxu0 0.0
    %133 = vmatpush1.msra.mxu0 0.0
    %134 = vmatprep.subr.mxu0 0.0
    %135 = vmatpush1.msra.mxu0 0.0
    %136 = vmatprep.subr.mxu0 0.0
    %137 = vmatpush1.msra.mxu0 0.0
    %138 = vmatprep.subr.mxu0 0.0
    %139 = vmatpush1.msra.mxu0 0.0
    %140 = vmatprep.subr.mxu0 0.0
    %141 = vmatpush1.msra.mxu0 0.0
    %142 = vmatprep.subr.mxu0 0.0
    %143 = vmatpush1.msra.mxu0 0.0
    %144 = vmatprep.subr.mxu0 0.0
    %145 = vmatpush1.msra.mxu0 0.0
    %146 = vmatprep.subr.mxu0 0.0
    %147 = vmatpush1.msra.mxu0 0.0
    %148 = vmatprep.subr.mxu0 0.0
    %149 = vmatpush1.msra.mxu0 0.0
    %150 = vmatprep.subr.mxu0 0.0
    %151 = vmatpush1.msra.mxu0 0.0
    %152 = vmatprep.subr.mxu0 0.0
    %153 = vmatpush1.msra.mxu0 0.0
    %154 = vmatprep.subr.mxu0 0.0
    %155 = vmatpush1.msra.mxu0 0.0
    %156 = vmatprep.subr.mxu0 0.0
    %157 = vmatpush1.msra.mxu0 0.0
    %158 = vmatprep.subr.mxu0 0.0
    %159 = vmatpush1.msra.mxu0 0.0
    %160 = vmatprep.subr.mxu0 0.0
    %161 = vmatpush1.msra.mxu0 0.0
    %162 = vmatprep.subr.mxu0 0.0
    %163 = vmatpush1.msra.mxu0 0.0
    %164 = vmatprep.mubr.f32.mxu0 0.0
    %165 = vmatmul.mubr.f32.gmra.mrb[0].mxu0 %v81
    %v166 = vpop.f32.mrb[0].mxu0
    %v167 = vadd.f32 %v83, %v166
    %v168 = vpop.f32.mrb[0].mxu0
    %169 = vdwg.mxu0
    %v170 = vmul.f32 %v167, 0.5
    %v171 = vtanh.pop %v170
    %v172 = vmul.f32 %v171, 0.5
    %v173 = vadd.f32 %v172, 0.5
    %v174 = vld [vmem:[#allocation7 + $0x8] sm:$0xff]
    %v175 = vld [vmem:[#allocation7 + $0x28] sm:$0xff]
    %v176 = vld [vmem:[#allocation7 + $0x48] sm:$0xff]
    %v177 = vld [vmem:[#allocation7 + $0x68] sm:$0xff]
    %v178 = vld [vmem:[#allocation7 + $0x88] sm:$0xff]
    %v179 = vld [vmem:[#allocation7 + $0xa8] sm:$0xff]
    %v180 = vld [vmem:[#allocation7 + $0xc8] sm:$0xff]
    %v181 = vld [vmem:[#allocation7 + $0xe8] sm:$0xff]
    %v182 = vld [vmem:[#allocation7 + $0x108] sm:$0xff]
    %v183 = vld [vmem:[#allocation7 + $0x128] sm:$0xff]
    %v184 = vld [vmem:[#allocation7 + $0x148] sm:$0xff]
    %v185 = vld [vmem:[#allocation7 + $0x168] sm:$0xff]
    %v186 = vld [vmem:[#allocation7 + $0x188] sm:$0xff]
    %v187 = vld [vmem:[#allocation7 + $0x1a8] sm:$0xff]
    %v188 = vld [vmem:[#allocation7 + $0x1c8] sm:$0xff]
    %v189 = vld [vmem:[#allocation7 + $0x1e8] sm:$0xff]
    %v192 = vunpack.c.l.s4 1983009808
    %v193 = vunpack.c.0.s8 %v192
    %v194 = vlaneseq
    %v195 = vshrl.u32 %v194, 7
    %v196 = vsub.s32 %v193, %v195
    %v197 = vrot.slane %v83, %v196
    %v198 = vcombine.high %v197, %v197
    %200 = vmatprep.subr.mxu0 0.0
    %201 = vmatpush1.msra.mxu0 %v174
    %202 = vmatprep.subr.mxu0 0.0
    %203 = vmatpush1.msra.mxu0 %v175
    %204 = vmatprep.subr.mxu0 0.0
    %205 = vmatpush1.msra.mxu0 %v176
    %206 = vmatprep.subr.mxu0 0.0
    %207 = vmatpush1.msra.mxu0 %v177
    %208 = vmatprep.subr.mxu0 0.0
    %209 = vmatpush1.msra.mxu0 %v178
    %210 = vmatprep.subr.mxu0 0.0
    %211 = vmatpush1.msra.mxu0 %v179
    %212 = vmatprep.subr.mxu0 0.0
    %213 = vmatpush1.msra.mxu0 %v180
    %214 = vmatprep.subr.mxu0 0.0
    %215 = vmatpush1.msra.mxu0 %v181
    %216 = vmatprep.subr.mxu0 0.0
    %217 = vmatpush1.msra.mxu0 %v182
    %218 = vmatprep.subr.mxu0 0.0
    %219 = vmatpush1.msra.mxu0 %v183
    %220 = vmatprep.subr.mxu0 0.0
    %221 = vmatpush1.msra.mxu0 %v184
    %222 = vmatprep.subr.mxu0 0.0
    %223 = vmatpush1.msra.mxu0 %v185
    %224 = vmatprep.subr.mxu0 0.0
    %225 = vmatpush1.msra.mxu0 %v186
    %226 = vmatprep.subr.mxu0 0.0
    %227 = vmatpush1.msra.mxu0 %v187
    %228 = vmatprep.subr.mxu0 0.0
    %229 = vmatpush1.msra.mxu0 %v188
    %230 = vmatprep.subr.mxu0 0.0
    %231 = vmatpush1.msra.mxu0 %v189
    %232 = vmatprep.subr.mxu0 0.0
    %233 = vmatpush1.msra.mxu0 0.0
    %234 = vmatprep.subr.mxu0 0.0
    %235 = vmatpush1.msra.mxu0 0.0
    %236 = vmatprep.subr.mxu0 0.0
    %237 = vmatpush1.msra.mxu0 0.0
    %238 = vmatprep.subr.mxu0 0.0
    %239 = vmatpush1.msra.mxu0 0.0
    %240 = vmatprep.subr.mxu0 0.0
    %241 = vmatpush1.msra.mxu0 0.0
    %242 = vmatprep.subr.mxu0 0.0
    %243 = vmatpush1.msra.mxu0 0.0
    %244 = vmatprep.subr.mxu0 0.0
    %245 = vmatpush1.msra.mxu0 0.0
    %246 = vmatprep.subr.mxu0 0.0
    %247 = vmatpush1.msra.mxu0 0.0
    %248 = vmatprep.subr.mxu0 0.0
    %249 = vmatpush1.msra.mxu0 0.0
    %250 = vmatprep.subr.mxu0 0.0
    %251 = vmatpush1.msra.mxu0 0.0
    %252 = vmatprep.subr.mxu0 0.0
    %253 = vmatpush1.msra.mxu0 0.0
    %254 = vmatprep.subr.mxu0 0.0
    %255 = vmatpush1.msra.mxu0 0.0
    %256 = vmatprep.subr.mxu0 0.0
    %257 = vmatpush1.msra.mxu0 0.0
    %258 = vmatprep.subr.mxu0 0.0
    %259 = vmatpush1.msra.mxu0 0.0
    %260 = vmatprep.subr.mxu0 0.0
    %261 = vmatpush1.msra.mxu0 0.0
    %262 = vmatprep.subr.mxu0 0.0
    %263 = vmatpush1.msra.mxu0 0.0
    %264 = vmatprep.mubr.f32.mxu0 0.0
    %265 = vmatmul.mubr.f32.gmra.mrb[0].mxu0 %v81
    %v266 = vpop.f32.mrb[0].mxu0
    %v267 = vadd.f32 %v198, %v266
    %v268 = vpop.f32.mrb[0].mxu0
    %269 = vdwg.mxu0
    %v270 = vmul.f32 %v267, 0.5
    %v271 = vtanh.pop %v270
    %v272 = vmul.f32 %v271, 0.5
    %v273 = vadd.f32 %v272, 0.5
    %v274 = vld [vmem:[#allocation7 + $0x10] sm:$0xff]
    %v275 = vld [vmem:[#allocation7 + $0x30] sm:$0xff]
    %v276 = vld [vmem:[#allocation7 + $0x50] sm:$0xff]
    %v277 = vld [vmem:[#allocation7 + $0x70] sm:$0xff]
    %v278 = vld [vmem:[#allocation7 + $0x90] sm:$0xff]
    %v279 = vld [vmem:[#allocation7 + $0xb0] sm:$0xff]
    %v280 = vld [vmem:[#allocation7 + $0xd0] sm:$0xff]
    %v281 = vld [vmem:[#allocation7 + $0xf0] sm:$0xff]
    %v282 = vld [vmem:[#allocation7 + $0x110] sm:$0xff]
    %v283 = vld [vmem:[#allocation7 + $0x130] sm:$0xff]
    %v284 = vld [vmem:[#allocation7 + $0x150] sm:$0xff]
    %v285 = vld [vmem:[#allocation7 + $0x170] sm:$0xff]
    %v286 = vld [vmem:[#allocation7 + $0x190] sm:$0xff]
    %v287 = vld [vmem:[#allocation7 + $0x1b0] sm:$0xff]
    %v288 = vld [vmem:[#allocation7 + $0x1d0] sm:$0xff]
    %v289 = vld [vmem:[#allocation7 + $0x1f0] sm:$0xff]
    %v290 = vcombine.high %v83, %v83
    %v292 = vunpack.c.l.s4 1983009808
    %v293 = vunpack.c.0.s8 %v292
    %v294 = vlaneseq
    %v295 = vshrl.u32 %v294, 7
    %v296 = vsub.s32 %v293, %v295
    %v297 = vrot.slane %v290, %v296
    %299 = vmatprep.subr.mxu0 0.0
    %300 = vmatpush1.msra.mxu0 %v274
    %301 = vmatprep.subr.mxu0 0.0
    %302 = vmatpush1.msra.mxu0 %v275
    %303 = vmatprep.subr.mxu0 0.0
    %304 = vmatpush1.msra.mxu0 %v276
    %305 = vmatprep.subr.mxu0 0.0
    %306 = vmatpush1.msra.mxu0 %v277
    %307 = vmatprep.subr.mxu0 0.0
    %308 = vmatpush1.msra.mxu0 %v278
    %309 = vmatprep.subr.mxu0 0.0
    %310 = vmatpush1.msra.mxu0 %v279
    %311 = vmatprep.subr.mxu0 0.0
    %312 = vmatpush1.msra.mxu0 %v280
    %313 = vmatprep.subr.mxu0 0.0
    %314 = vmatpush1.msra.mxu0 %v281
    %315 = vmatprep.subr.mxu0 0.0
    %316 = vmatpush1.msra.mxu0 %v282
    %317 = vmatprep.subr.mxu0 0.0
    %318 = vmatpush1.msra.mxu0 %v283
    %319 = vmatprep.subr.mxu0 0.0
    %320 = vmatpush1.msra.mxu0 %v284
    %321 = vmatprep.subr.mxu0 0.0
    %322 = vmatpush1.msra.mxu0 %v285
    %323 = vmatprep.subr.mxu0 0.0
    %324 = vmatpush1.msra.mxu0 %v286
    %325 = vmatprep.subr.mxu0 0.0
    %326 = vmatpush1.msra.mxu0 %v287
    %327 = vmatprep.subr.mxu0 0.0
    %328 = vmatpush1.msra.mxu0 %v288
    %329 = vmatprep.subr.mxu0 0.0
    %330 = vmatpush1.msra.mxu0 %v289
    %331 = vmatprep.subr.mxu0 0.0
    %332 = vmatpush1.msra.mxu0 0.0
    %333 = vmatprep.subr.mxu0 0.0
    %334 = vmatpush1.msra.mxu0 0.0
    %335 = vmatprep.subr.mxu0 0.0
    %336 = vmatpush1.msra.mxu0 0.0
    %337 = vmatprep.subr.mxu0 0.0
    %338 = vmatpush1.msra.mxu0 0.0
    %339 = vmatprep.subr.mxu0 0.0
    %340 = vmatpush1.msra.mxu0 0.0
    %341 = vmatprep.subr.mxu0 0.0
    %342 = vmatpush1.msra.mxu0 0.0
    %343 = vmatprep.subr.mxu0 0.0
    %344 = vmatpush1.msra.mxu0 0.0
    %345 = vmatprep.subr.mxu0 0.0
    %346 = vmatpush1.msra.mxu0 0.0
    %347 = vmatprep.subr.mxu0 0.0
    %348 = vmatpush1.msra.mxu0 0.0
    %349 = vmatprep.subr.mxu0 0.0
    %350 = vmatpush1.msra.mxu0 0.0
    %351 = vmatprep.subr.mxu0 0.0
    %352 = vmatpush1.msra.mxu0 0.0
    %353 = vmatprep.subr.mxu0 0.0
    %354 = vmatpush1.msra.mxu0 0.0
    %355 = vmatprep.subr.mxu0 0.0
    %356 = vmatpush1.msra.mxu0 0.0
    %357 = vmatprep.subr.mxu0 0.0
    %358 = vmatpush1.msra.mxu0 0.0
    %359 = vmatprep.subr.mxu0 0.0
    %360 = vmatpush1.msra.mxu0 0.0
    %361 = vmatprep.subr.mxu0 0.0
    %362 = vmatpush1.msra.mxu0 0.0
    %363 = vmatprep.mubr.f32.mxu0 0.0
    %364 = vmatmul.mubr.f32.gmra.mrb[0].mxu0 %v81
    %v365 = vpop.f32.mrb[0].mxu0
    %v366 = vadd.f32 %v297, %v365
    %v367 = vpop.f32.mrb[0].mxu0
    %368 = vdwg.mxu0
    %v369 = vtanh.pop %v366
    %v370 = vld [vmem:[#allocation7 + $0x18] sm:$0xff]
    %v371 = vld [vmem:[#allocation7 + $0x38] sm:$0xff]
    %v372 = vld [vmem:[#allocation7 + $0x58] sm:$0xff]
    %v373 = vld [vmem:[#allocation7 + $0x78] sm:$0xff]
    %v374 = vld [vmem:[#allocation7 + $0x98] sm:$0xff]
    %v375 = vld [vmem:[#allocation7 + $0xb8] sm:$0xff]
    %v376 = vld [vmem:[#allocation7 + $0xd8] sm:$0xff]
    %v377 = vld [vmem:[#allocation7 + $0xf8] sm:$0xff]
    %v378 = vld [vmem:[#allocation7 + $0x118] sm:$0xff]
    %v379 = vld [vmem:[#allocation7 + $0x138] sm:$0xff]
    %v380 = vld [vmem:[#allocation7 + $0x158] sm:$0xff]
    %v381 = vld [vmem:[#allocation7 + $0x178] sm:$0xff]
    %v382 = vld [vmem:[#allocation7 + $0x198] sm:$0xff]
    %v383 = vld [vmem:[#allocation7 + $0x1b8] sm:$0xff]
    %v384 = vld [vmem:[#allocation7 + $0x1d8] sm:$0xff]
    %v385 = vld [vmem:[#allocation7 + $0x1f8] sm:$0xff]
    %v386 = vcombine.high %v297, %v297
    %388 = vmatprep.subr.mxu0 0.0
    %389 = vmatpush1.msra.mxu0 %v370
    %390 = vmatprep.subr.mxu0 0.0
    %391 = vmatpush1.msra.mxu0 %v371
    %392 = vmatprep.subr.mxu0 0.0
    %393 = vmatpush1.msra.mxu0 %v372
    %394 = vmatprep.subr.mxu0 0.0
    %395 = vmatpush1.msra.mxu0 %v373
    %396 = vmatprep.subr.mxu0 0.0
    %397 = vmatpush1.msra.mxu0 %v374
    %398 = vmatprep.subr.mxu0 0.0
    %399 = vmatpush1.msra.mxu0 %v375
    %400 = vmatprep.subr.mxu0 0.0
    %401 = vmatpush1.msra.mxu0 %v376
    %402 = vmatprep.subr.mxu0 0.0
    %403 = vmatpush1.msra.mxu0 %v377
    %404 = vmatprep.subr.mxu0 0.0
    %405 = vmatpush1.msra.mxu0 %v378
    %406 = vmatprep.subr.mxu0 0.0
    %407 = vmatpush1.msra.mxu0 %v379
    %408 = vmatprep.subr.mxu0 0.0
    %409 = vmatpush1.msra.mxu0 %v380
    %410 = vmatprep.subr.mxu0 0.0
    %411 = vmatpush1.msra.mxu0 %v381
    %412 = vmatprep.subr.mxu0 0.0
    %413 = vmatpush1.msra.mxu0 %v382
    %414 = vmatprep.subr.mxu0 0.0
    %415 = vmatpush1.msra.mxu0 %v383
    %416 = vmatprep.subr.mxu0 0.0
    %417 = vmatpush1.msra.mxu0 %v384
    %418 = vmatprep.subr.mxu0 0.0
    %419 = vmatpush1.msra.mxu0 %v385
    %420 = vmatprep.subr.mxu0 0.0
    %421 = vmatpush1.msra.mxu0 0.0
    %422 = vmatprep.subr.mxu0 0.0
    %423 = vmatpush1.msra.mxu0 0.0
    %424 = vmatprep.subr.mxu0 0.0
    %425 = vmatpush1.msra.mxu0 0.0
    %426 = vmatprep.subr.mxu0 0.0
    %427 = vmatpush1.msra.mxu0 0.0
    %428 = vmatprep.subr.mxu0 0.0
    %429 = vmatpush1.msra.mxu0 0.0
    %430 = vmatprep.subr.mxu0 0.0
    %431 = vmatpush1.msra.mxu0 0.0
    %432 = vmatprep.subr.mxu0 0.0
    %433 = vmatpush1.msra.mxu0 0.0
    %434 = vmatprep.subr.mxu0 0.0
    %435 = vmatpush1.msra.mxu0 0.0
    %436 = vmatprep.subr.mxu0 0.0
    %437 = vmatpush1.msra.mxu0 0.0
    %438 = vmatprep.subr.mxu0 0.0
    %439 = vmatpush1.msra.mxu0 0.0
    %440 = vmatprep.subr.mxu0 0.0
    %441 = vmatpush1.msra.mxu0 0.0
    %442 = vmatprep.subr.mxu0 0.0
    %443 = vmatpush1.msra.mxu0 0.0
    %444 = vmatprep.subr.mxu0 0.0
    %445 = vmatpush1.msra.mxu0 0.0
    %446 = vmatprep.subr.mxu0 0.0
    %447 = vmatpush1.msra.mxu0 0.0
    %448 = vmatprep.subr.mxu0 0.0
    %449 = vmatpush1.msra.mxu0 0.0
    %450 = vmatprep.subr.mxu0 0.0
    %451 = vmatpush1.msra.mxu0 0.0
    %452 = vmatprep.mubr.f32.mxu0 0.0
    %453 = vmatmul.mubr.f32.gmra.mrb[0].mxu0 %v81
    %v454 = vpop.f32.mrb[0].mxu0
    %v455 = vadd.f32 %v386, %v454
    %v456 = vpop.f32.mrb[0].mxu0
    %457 = vdwg.mxu0
    %v458 = vmul.f32 %v455, 0.5
    %v459 = vtanh.pop %v458
    %v460 = vmul.f32 %v459, 0.5
    %v461 = vadd.f32 %v460, 0.5
    %v462 = vmul.f32 %v273, %v82
    %v463 = vmul.f32 %v173, %v369
    %v464 = vadd.f32 %v462, %v463
    %v465 = vtanh.pop %v464
    %v466 = vmul.f32 %v461, %v465
    %467 = vst [vmem:[#allocation12] sm:$0x3] %v466
    %s468 = scalar_lea.vmem [#allocation4], 8
    %v469 = vld [vmem:[%s468] sm:$0xff]
    %v470 = vld [vmem:[#allocation7] sm:$0xff]
    %v471 = vld [vmem:[#allocation7 + $0x20] sm:$0xff]
    %v472 = vld [vmem:[#allocation7 + $0x40] sm:$0xff]
    %v473 = vld [vmem:[#allocation7 + $0x60] sm:$0xff]
    %v474 = vld [vmem:[#allocation7 + $0x80] sm:$0xff]
    %v475 = vld [vmem:[#allocation7 + $0xa0] sm:$0xff]
    %v476 = vld [vmem:[#allocation7 + $0xc0] sm:$0xff]
    %v477 = vld [vmem:[#allocation7 + $0xe0] sm:$0xff]
    %v478 = vld [vmem:[#allocation7 + $0x100] sm:$0xff]
    %v479 = vld [vmem:[#allocation7 + $0x120] sm:$0xff]
    %v480 = vld [vmem:[#allocation7 + $0x140] sm:$0xff]
    %v481 = vld [vmem:[#allocation7 + $0x160] sm:$0xff]
    %v482 = vld [vmem:[#allocation7 + $0x180] sm:$0xff]
    %v483 = vld [vmem:[#allocation7 + $0x1a0] sm:$0xff]
    %v484 = vld [vmem:[#allocation7 + $0x1c0] sm:$0xff]
    %v485 = vld [vmem:[#allocation7 + $0x1e0] sm:$0xff]
    %486 = vmatprep.subr.mxu0 0.0
    %487 = vmatpush1.msra.mxu0 %v470
    %488 = vmatprep.subr.mxu0 0.0
    %489 = vmatpush1.msra.mxu0 %v471
    %490 = vmatprep.subr.mxu0 0.0
    %491 = vmatpush1.msra.mxu0 %v472
    %492 = vmatprep.subr.mxu0 0.0
    %493 = vmatpush1.msra.mxu0 %v473
    %494 = vmatprep.subr.mxu0 0.0
    %495 = vmatpush1.msra.mxu0 %v474
    %496 = vmatprep.subr.mxu0 0.0
    %497 = vmatpush1.msra.mxu0 %v475
    %498 = vmatprep.subr.mxu0 0.0
    %499 = vmatpush1.msra.mxu0 %v476
    %500 = vmatprep.subr.mxu0 0.0
    %501 = vmatpush1.msra.mxu0 %v477
    %502 = vmatprep.subr.mxu0 0.0
    %503 = vmatpush1.msra.mxu0 %v478
    %504 = vmatprep.subr.mxu0 0.0
    %505 = vmatpush1.msra.mxu0 %v479
    %506 = vmatprep.subr.mxu0 0.0
    %507 = vmatpush1.msra.mxu0 %v480
    %508 = vmatprep.subr.mxu0 0.0
    %509 = vmatpush1.msra.mxu0 %v481
    %510 = vmatprep.subr.mxu0 0.0
    %511 = vmatpush1.msra.mxu0 %v482
    %512 = vmatprep.subr.mxu0 0.0
    %513 = vmatpush1.msra.mxu0 %v483
    %514 = vmatprep.subr.mxu0 0.0
    %515 = vmatpush1.msra.mxu0 %v484
    %516 = vmatprep.subr.mxu0 0.0
    %517 = vmatpush1.msra.mxu0 %v485
    %518 = vmatprep.subr.mxu0 0.0
    %519 = vmatpush1.msra.mxu0 0.0
    %520 = vmatprep.subr.mxu0 0.0
    %521 = vmatpush1.msra.mxu0 0.0
    %522 = vmatprep.subr.mxu0 0.0
    %523 = vmatpush1.msra.mxu0 0.0
    %524 = vmatprep.subr.mxu0 0.0
    %525 = vmatpush1.msra.mxu0 0.0
    %526 = vmatprep.subr.mxu0 0.0
    %527 = vmatpush1.msra.mxu0 0.0
    %528 = vmatprep.subr.mxu0 0.0
    %529 = vmatpush1.msra.mxu0 0.0
    %530 = vmatprep.subr.mxu0 0.0
    %531 = vmatpush1.msra.mxu0 0.0
    %532 = vmatprep.subr.mxu0 0.0
    %533 = vmatpush1.msra.mxu0 0.0
    %534 = vmatprep.subr.mxu0 0.0
    %535 = vmatpush1.msra.mxu0 0.0
    %536 = vmatprep.subr.mxu0 0.0
    %537 = vmatpush1.msra.mxu0 0.0
    %538 = vmatprep.subr.mxu0 0.0
    %539 = vmatpush1.msra.mxu0 0.0
    %540 = vmatprep.subr.mxu0 0.0
    %541 = vmatpush1.msra.mxu0 0.0
    %542 = vmatprep.subr.mxu0 0.0
    %543 = vmatpush1.msra.mxu0 0.0
    %544 = vmatprep.subr.mxu0 0.0
    %545 = vmatpush1.msra.mxu0 0.0
    %546 = vmatprep.subr.mxu0 0.0
    %547 = vmatpush1.msra.mxu0 0.0
    %548 = vmatprep.subr.mxu0 0.0
    %549 = vmatpush1.msra.mxu0 0.0
    %550 = vmatprep.mubr.f32.mxu0 0.0
    %551 = vmatmul.mubr.f32.gmra.mrb[0].mxu0 %v466
    %v552 = vpop.f32.mrb[0].mxu0
    %v553 = vadd.f32 %v469, %v552
    %v554 = vpop.f32.mrb[0].mxu0
    %555 = vdwg.mxu0
    %v556 = vmul.f32 %v553, 0.5
    %v557 = vtanh.pop %v556
    %v558 = vmul.f32 %v557, 0.5
    %v559 = vadd.f32 %v558, 0.5
    %v560 = vld [vmem:[#allocation7 + $0x8] sm:$0xff]
    %v561 = vld [vmem:[#allocation7 + $0x28] sm:$0xff]
    %v562 = vld [vmem:[#allocation7 + $0x48] sm:$0xff]
    %v563 = vld [vmem:[#allocation7 + $0x68] sm:$0xff]
    %v564 = vld [vmem:[#allocation7 + $0x88] sm:$0xff]
    %v565 = vld [vmem:[#allocation7 + $0xa8] sm:$0xff]
    %v566 = vld [vmem:[#allocation7 + $0xc8] sm:$0xff]
    %v567 = vld [vmem:[#allocation7 + $0xe8] sm:$0xff]
    %v568 = vld [vmem:[#allocation7 + $0x108] sm:$0xff]
    %v569 = vld [vmem:[#allocation7 + $0x128] sm:$0xff]
    %v570 = vld [vmem:[#allocation7 + $0x148] sm:$0xff]
    %v571 = vld [vmem:[#allocation7 + $0x168] sm:$0xff]
    %v572 = vld [vmem:[#allocation7 + $0x188] sm:$0xff]
    %v573 = vld [vmem:[#allocation7 + $0x1a8] sm:$0xff]
    %v574 = vld [vmem:[#allocation7 + $0x1c8] sm:$0xff]
    %v575 = vld [vmem:[#allocation7 + $0x1e8] sm:$0xff]
    %v578 = vunpack.c.l.s4 1983009808
    %v579 = vunpack.c.0.s8 %v578
    %v580 = vlaneseq
    %v581 = vshrl.u32 %v580, 7
    %v582 = vsub.s32 %v579, %v581
    %v583 = vrot.slane %v469, %v582
    %v584 = vcombine.high %v583, %v583
    %586 = vmatprep.subr.mxu0 0.0
    %587 = vmatpush1.msra.mxu0 %v560
    %588 = vmatprep.subr.mxu0 0.0
    %589 = vmatpush1.msra.mxu0 %v561
    %590 = vmatprep.subr.mxu0 0.0
    %591 = vmatpush1.msra.mxu0 %v562
    %592 = vmatprep.subr.mxu0 0.0
    %593 = vmatpush1.msra.mxu0 %v563
    %594 = vmatprep.subr.mxu0 0.0
    %595 = vmatpush1.msra.mxu0 %v564
    %596 = vmatprep.subr.mxu0 0.0
    %597 = vmatpush1.msra.mxu0 %v565
    %598 = vmatprep.subr.mxu0 0.0
    %599 = vmatpush1.msra.mxu0 %v566
    %600 = vmatprep.subr.mxu0 0.0
    %601 = vmatpush1.msra.mxu0 %v567
    %602 = vmatprep.subr.mxu0 0.0
    %603 = vmatpush1.msra.mxu0 %v568
    %604 = vmatprep.subr.mxu0 0.0
    %605 = vmatpush1.msra.mxu0 %v569
    %606 = vmatprep.subr.mxu0 0.0
    %607 = vmatpush1.msra.mxu0 %v570
    %608 = vmatprep.subr.mxu0 0.0
    %609 = vmatpush1.msra.mxu0 %v571
    %610 = vmatprep.subr.mxu0 0.0
    %611 = vmatpush1.msra.mxu0 %v572
    %612 = vmatprep.subr.mxu0 0.0
    %613 = vmatpush1.msra.mxu0 %v573
    %614 = vmatprep.subr.mxu0 0.0
    %615 = vmatpush1.msra.mxu0 %v574
    %616 = vmatprep.subr.mxu0 0.0
    %617 = vmatpush1.msra.mxu0 %v575
    %618 = vmatprep.subr.mxu0 0.0
    %619 = vmatpush1.msra.mxu0 0.0
    %620 = vmatprep.subr.mxu0 0.0
    %621 = vmatpush1.msra.mxu0 0.0
    %622 = vmatprep.subr.mxu0 0.0
    %623 = vmatpush1.msra.mxu0 0.0
    %624 = vmatprep.subr.mxu0 0.0
    %625 = vmatpush1.msra.mxu0 0.0
    %626 = vmatprep.subr.mxu0 0.0
    %627 = vmatpush1.msra.mxu0 0.0
    %628 = vmatprep.subr.mxu0 0.0
    %629 = vmatpush1.msra.mxu0 0.0
    %630 = vmatprep.subr.mxu0 0.0
    %631 = vmatpush1.msra.mxu0 0.0
    %632 = vmatprep.subr.mxu0 0.0
    %633 = vmatpush1.msra.mxu0 0.0
    %634 = vmatprep.subr.mxu0 0.0
    %635 = vmatpush1.msra.mxu0 0.0
    %636 = vmatprep.subr.mxu0 0.0
    %637 = vmatpush1.msra.mxu0 0.0
    %638 = vmatprep.subr.mxu0 0.0
    %639 = vmatpush1.msra.mxu0 0.0
    %640 = vmatprep.subr.mxu0 0.0
    %641 = vmatpush1.msra.mxu0 0.0
    %642 = vmatprep.subr.mxu0 0.0
    %643 = vmatpush1.msra.mxu0 0.0
    %644 = vmatprep.subr.mxu0 0.0
    %645 = vmatpush1.msra.mxu0 0.0
    %646 = vmatprep.subr.mxu0 0.0
    %647 = vmatpush1.msra.mxu0 0.0
    %648 = vmatprep.subr.mxu0 0.0
    %649 = vmatpush1.msra.mxu0 0.0
    %650 = vmatprep.mubr.f32.mxu0 0.0
    %651 = vmatmul.mubr.f32.gmra.mrb[0].mxu0 %v466
    %v652 = vpop.f32.mrb[0].mxu0
    %v653 = vadd.f32 %v584, %v652
    %v654 = vpop.f32.mrb[0].mxu0
    %655 = vdwg.mxu0
    %v656 = vmul.f32 %v653, 0.5
    %v657 = vtanh.pop %v656
    %v658 = vmul.f32 %v657, 0.5
    %v659 = vadd.f32 %v658, 0.5
    %v660 = vld [vmem:[#allocation7 + $0x10] sm:$0xff]
    %v661 = vld [vmem:[#allocation7 + $0x30] sm:$0xff]
    %v662 = vld [vmem:[#allocation7 + $0x50] sm:$0xff]
    %v663 = vld [vmem:[#allocation7 + $0x70] sm:$0xff]
    %v664 = vld [vmem:[#allocation7 + $0x90] sm:$0xff]
    %v665 = vld [vmem:[#allocation7 + $0xb0] sm:$0xff]
    %v666 = vld [vmem:[#allocation7 + $0xd0] sm:$0xff]
    %v667 = vld [vmem:[#allocation7 + $0xf0] sm:$0xff]
    %v668 = vld [vmem:[#allocation7 + $0x110] sm:$0xff]
    %v669 = vld [vmem:[#allocation7 + $0x130] sm:$0xff]
    %v670 = vld [vmem:[#allocation7 + $0x150] sm:$0xff]
    %v671 = vld [vmem:[#allocation7 + $0x170] sm:$0xff]
    %v672 = vld [vmem:[#allocation7 + $0x190] sm:$0xff]
    %v673 = vld [vmem:[#allocation7 + $0x1b0] sm:$0xff]
    %v674 = vld [vmem:[#allocation7 + $0x1d0] sm:$0xff]
    %v675 = vld [vmem:[#allocation7 + $0x1f0] sm:$0xff]
    %v676 = vcombine.high %v469, %v469
    %v678 = vunpack.c.l.s4 1983009808
    %v679 = vunpack.c.0.s8 %v678
    %v680 = vlaneseq
    %v681 = vshrl.u32 %v680, 7
    %v682 = vsub.s32 %v679, %v681
    %v683 = vrot.slane %v676, %v682
    %685 = vmatprep.subr.mxu0 0.0
    %686 = vmatpush1.msra.mxu0 %v660
    %687 = vmatprep.subr.mxu0 0.0
    %688 = vmatpush1.msra.mxu0 %v661
    %689 = vmatprep.subr.mxu0 0.0
    %690 = vmatpush1.msra.mxu0 %v662
    %691 = vmatprep.subr.mxu0 0.0
    %692 = vmatpush1.msra.mxu0 %v663
    %693 = vmatprep.subr.mxu0 0.0
    %694 = vmatpush1.msra.mxu0 %v664
    %695 = vmatprep.subr.mxu0 0.0
    %696 = vmatpush1.msra.mxu0 %v665
    %697 = vmatprep.subr.mxu0 0.0
    %698 = vmatpush1.msra.mxu0 %v666
    %699 = vmatprep.subr.mxu0 0.0
    %700 = vmatpush1.msra.mxu0 %v667
    %701 = vmatprep.subr.mxu0 0.0
    %702 = vmatpush1.msra.mxu0 %v668
    %703 = vmatprep.subr.mxu0 0.0
    %704 = vmatpush1.msra.mxu0 %v669
    %705 = vmatprep.subr.mxu0 0.0
    %706 = vmatpush1.msra.mxu0 %v670
    %707 = vmatprep.subr.mxu0 0.0
    %708 = vmatpush1.msra.mxu0 %v671
    %709 = vmatprep.subr.mxu0 0.0
    %710 = vmatpush1.msra.mxu0 %v672
    %711 = vmatprep.subr.mxu0 0.0
    %712 = vmatpush1.msra.mxu0 %v673
    %713 = vmatprep.subr.mxu0 0.0
    %714 = vmatpush1.msra.mxu0 %v674
    %715 = vmatprep.subr.mxu0 0.0
    %716 = vmatpush1.msra.mxu0 %v675
    %717 = vmatprep.subr.mxu0 0.0
    %718 = vmatpush1.msra.mxu0 0.0
    %719 = vmatprep.subr.mxu0 0.0
    %720 = vmatpush1.msra.mxu0 0.0
    %721 = vmatprep.subr.mxu0 0.0
    %722 = vmatpush1.msra.mxu0 0.0
    %723 = vmatprep.subr.mxu0 0.0
    %724 = vmatpush1.msra.mxu0 0.0
    %725 = vmatprep.subr.mxu0 0.0
    %726 = vmatpush1.msra.mxu0 0.0
    %727 = vmatprep.subr.mxu0 0.0
    %728 = vmatpush1.msra.mxu0 0.0
    %729 = vmatprep.subr.mxu0 0.0
    %730 = vmatpush1.msra.mxu0 0.0
    %731 = vmatprep.subr.mxu0 0.0
    %732 = vmatpush1.msra.mxu0 0.0
    %733 = vmatprep.subr.mxu0 0.0
    %734 = vmatpush1.msra.mxu0 0.0
    %735 = vmatprep.subr.mxu0 0.0
    %736 = vmatpush1.msra.mxu0 0.0
    %737 = vmatprep.subr.mxu0 0.0
    %738 = vmatpush1.msra.mxu0 0.0
    %739 = vmatprep.subr.mxu0 0.0
    %740 = vmatpush1.msra.mxu0 0.0
    %741 = vmatprep.subr.mxu0 0.0
    %742 = vmatpush1.msra.mxu0 0.0
    %743 = vmatprep.subr.mxu0 0.0
    %744 = vmatpush1.msra.mxu0 0.0
    %745 = vmatprep.subr.mxu0 0.0
    %746 = vmatpush1.msra.mxu0 0.0
    %747 = vmatprep.subr.mxu0 0.0
    %748 = vmatpush1.msra.mxu0 0.0
    %749 = vmatprep.mubr.f32.mxu0 0.0
    %750 = vmatmul.mubr.f32.gmra.mrb[0].mxu0 %v466
    %v751 = vpop.f32.mrb[0].mxu0
    %v752 = vadd.f32 %v683, %v751
    %v753 = vpop.f32.mrb[0].mxu0
    %754 = vdwg.mxu0
    %v755 = vtanh.pop %v752
    %v756 = vld [vmem:[#allocation7 + $0x18] sm:$0xff]
    %v757 = vld [vmem:[#allocation7 + $0x38] sm:$0xff]
    %v758 = vld [vmem:[#allocation7 + $0x58] sm:$0xff]
    %v759 = vld [vmem:[#allocation7 + $0x78] sm:$0xff]
    %v760 = vld [vmem:[#allocation7 + $0x98] sm:$0xff]
    %v761 = vld [vmem:[#allocation7 + $0xb8] sm:$0xff]
    %v762 = vld [vmem:[#allocation7 + $0xd8] sm:$0xff]
    %v763 = vld [vmem:[#allocation7 + $0xf8] sm:$0xff]
    %v764 = vld [vmem:[#allocation7 + $0x118] sm:$0xff]
    %v765 = vld [vmem:[#allocation7 + $0x138] sm:$0xff]
    %v766 = vld [vmem:[#allocation7 + $0x158] sm:$0xff]
    %v767 = vld [vmem:[#allocation7 + $0x178] sm:$0xff]
    %v768 = vld [vmem:[#allocation7 + $0x198] sm:$0xff]
    %v769 = vld [vmem:[#allocation7 + $0x1b8] sm:$0xff]
    %v770 = vld [vmem:[#allocation7 + $0x1d8] sm:$0xff]
    %v771 = vld [vmem:[#allocation7 + $0x1f8] sm:$0xff]
    %v772 = vcombine.high %v683, %v683
    %774 = vmatprep.subr.mxu0 0.0
    %775 = vmatpush1.msra.mxu0 %v756
    %776 = vmatprep.subr.mxu0 0.0
    %777 = vmatpush1.msra.mxu0 %v757
    %778 = vmatprep.subr.mxu0 0.0
    %779 = vmatpush1.msra.mxu0 %v758
    %780 = vmatprep.subr.mxu0 0.0
    %781 = vmatpush1.msra.mxu0 %v759
    %782 = vmatprep.subr.mxu0 0.0
    %783 = vmatpush1.msra.mxu0 %v760
    %784 = vmatprep.subr.mxu0 0.0
    %785 = vmatpush1.msra.mxu0 %v761
    %786 = vmatprep.subr.mxu0 0.0
    %787 = vmatpush1.msra.mxu0 %v762
    %788 = vmatprep.subr.mxu0 0.0
    %789 = vmatpush1.msra.mxu0 %v763
    %790 = vmatprep.subr.mxu0 0.0
    %791 = vmatpush1.msra.mxu0 %v764
    %792 = vmatprep.subr.mxu0 0.0
    %793 = vmatpush1.msra.mxu0 %v765
    %794 = vmatprep.subr.mxu0 0.0
    %795 = vmatpush1.msra.mxu0 %v766
    %796 = vmatprep.subr.mxu0 0.0
    %797 = vmatpush1.msra.mxu0 %v767
    %798 = vmatprep.subr.mxu0 0.0
    %799 = vmatpush1.msra.mxu0 %v768
    %800 = vmatprep.subr.mxu0 0.0
    %801 = vmatpush1.msra.mxu0 %v769
    %802 = vmatprep.subr.mxu0 0.0
    %803 = vmatpush1.msra.mxu0 %v770
    %804 = vmatprep.subr.mxu0 0.0
    %805 = vmatpush1.msra.mxu0 %v771
    %806 = vmatprep.subr.mxu0 0.0
    %807 = vmatpush1.msra.mxu0 0.0
    %808 = vmatprep.subr.mxu0 0.0
    %809 = vmatpush1.msra.mxu0 0.0
    %810 = vmatprep.subr.mxu0 0.0
    %811 = vmatpush1.msra.mxu0 0.0
    %812 = vmatprep.subr.mxu0 0.0
    %813 = vmatpush1.msra.mxu0 0.0
    %814 = vmatprep.subr.mxu0 0.0
    %815 = vmatpush1.msra.mxu0 0.0
    %816 = vmatprep.subr.mxu0 0.0
    %817 = vmatpush1.msra.mxu0 0.0
    %818 = vmatprep.subr.mxu0 0.0
    %819 = vmatpush1.msra.mxu0 0.0
    %820 = vmatprep.subr.mxu0 0.0
    %821 = vmatpush1.msra.mxu0 0.0
    %822 = vmatprep.subr.mxu0 0.0
    %823 = vmatpush1.msra.mxu0 0.0
    %824 = vmatprep.subr.mxu0 0.0
    %825 = vmatpush1.msra.mxu0 0.0
    %826 = vmatprep.subr.mxu0 0.0
    %827 = vmatpush1.msra.mxu0 0.0
    %828 = vmatprep.subr.mxu0 0.0
    %829 = vmatpush1.msra.mxu0 0.0
    %830 = vmatprep.subr.mxu0 0.0
    %831 = vmatpush1.msra.mxu0 0.0
    %832 = vmatprep.subr.mxu0 0.0
    %833 = vmatpush1.msra.mxu0 0.0
    %834 = vmatprep.subr.mxu0 0.0
    %835 = vmatpush1.msra.mxu0 0.0
    %836 = vmatprep.subr.mxu0 0.0
    %837 = vmatpush1.msra.mxu0 0.0
    %838 = vmatprep.mubr.f32.mxu0 0.0
    %839 = vmatmul.mubr.f32.gmra.mrb[0].mxu0 %v466
    %v840 = vpop.f32.mrb[0].mxu0
    %v841 = vadd.f32 %v772, %v840
    %v842 = vpop.f32.mrb[0].mxu0
    %843 = vdwg.mxu0
    %v844 = vmul.f32 %v841, 0.5
    %v845 = vtanh.pop %v844
    %v846 = vmul.f32 %v845, 0.5
    %v847 = vadd.f32 %v846, 0.5
    %v848 = vmul.f32 %v659, %v464
    %v849 = vmul.f32 %v559, %v755
    %v850 = vadd.f32 %v848, %v849
    %v851 = vtanh.pop %v850
    %v852 = vmul.f32 %v847, %v851
    %s853 = scalar_lea.vmem [#allocation12], 2
    %854 = vst [vmem:[%s853] sm:$0x3] %v852
    %s855 = scalar_lea.vmem [#allocation4], 16
    %v856 = vld [vmem:[%s855] sm:$0xff]
    %v857 = vld [vmem:[#allocation7] sm:$0xff]
    %v858 = vld [vmem:[#allocation7 + $0x20] sm:$0xff]
    %v859 = vld [vmem:[#allocation7 + $0x40] sm:$0xff]
    %v860 = vld [vmem:[#allocation7 + $0x60] sm:$0xff]
    %v861 = vld [vmem:[#allocation7 + $0x80] sm:$0xff]
    %v862 = vld [vmem:[#allocation7 + $0xa0] sm:$0xff]
    %v863 = vld [vmem:[#allocation7 + $0xc0] sm:$0xff]
    %v864 = vld [vmem:[#allocation7 + $0xe0] sm:$0xff]
    %v865 = vld [vmem:[#allocation7 + $0x100] sm:$0xff]
    %v866 = vld [vmem:[#allocation7 + $0x120] sm:$0xff]
    %v867 = vld [vmem:[#allocation7 + $0x140] sm:$0xff]
    %v868 = vld [vmem:[#allocation7 + $0x160] sm:$0xff]
    %v869 = vld [vmem:[#allocation7 + $0x180] sm:$0xff]
    %v870 = vld [vmem:[#allocation7 + $0x1a0] sm:$0xff]
    %v871 = vld [vmem:[#allocation7 + $0x1c0] sm:$0xff]
    %v872 = vld [vmem:[#allocation7 + $0x1e0] sm:$0xff]
    %873 = vmatprep.subr.mxu0 0.0
    %874 = vmatpush1.msra.mxu0 %v857
    %875 = vmatprep.subr.mxu0 0.0
    %876 = vmatpush1.msra.mxu0 %v858
    %877 = vmatprep.subr.mxu0 0.0
    %878 = vmatpush1.msra.mxu0 %v859
    %879 = vmatprep.subr.mxu0 0.0
    %880 = vmatpush1.msra.mxu0 %v860
    %881 = vmatprep.subr.mxu0 0.0
    %882 = vmatpush1.msra.mxu0 %v861
    %883 = vmatprep.subr.mxu0 0.0
    %884 = vmatpush1.msra.mxu0 %v862
    %885 = vmatprep.subr.mxu0 0.0
    %886 = vmatpush1.msra.mxu0 %v863
    %887 = vmatprep.subr.mxu0 0.0
    %888 = vmatpush1.msra.mxu0 %v864
    %889 = vmatprep.subr.mxu0 0.0
    %890 = vmatpush1.msra.mxu0 %v865
    %891 = vmatprep.subr.mxu0 0.0
    %892 = vmatpush1.msra.mxu0 %v866
    %893 = vmatprep.subr.mxu0 0.0
    %894 = vmatpush1.msra.mxu0 %v867
    %895 = vmatprep.subr.mxu0 0.0
    %896 = vmatpush1.msra.mxu0 %v868
    %897 = vmatprep.subr.mxu0 0.0
    %898 = vmatpush1.msra.mxu0 %v869
    %899 = vmatprep.subr.mxu0 0.0
    %900 = vmatpush1.msra.mxu0 %v870
    %901 = vmatprep.subr.mxu0 0.0
    %902 = vmatpush1.msra.mxu0 %v871
    %903 = vmatprep.subr.mxu0 0.0
    %904 = vmatpush1.msra.mxu0 %v872
    %905 = vmatprep.subr.mxu0 0.0
    %906 = vmatpush1.msra.mxu0 0.0
    %907 = vmatprep.subr.mxu0 0.0
    %908 = vmatpush1.msra.mxu0 0.0
    %909 = vmatprep.subr.mxu0 0.0
    %910 = vmatpush1.msra.mxu0 0.0
    %911 = vmatprep.subr.mxu0 0.0
    %912 = vmatpush1.msra.mxu0 0.0
    %913 = vmatprep.subr.mxu0 0.0
    %914 = vmatpush1.msra.mxu0 0.0
    %915 = vmatprep.subr.mxu0 0.0
    %916 = vmatpush1.msra.mxu0 0.0
    %917 = vmatprep.subr.mxu0 0.0
    %918 = vmatpush1.msra.mxu0 0.0
    %919 = vmatprep.subr.mxu0 0.0
    %920 = vmatpush1.msra.mxu0 0.0
    %921 = vmatprep.subr.mxu0 0.0
    %922 = vmatpush1.msra.mxu0 0.0
    %923 = vmatprep.subr.mxu0 0.0
    %924 = vmatpush1.msra.mxu0 0.0
    %925 = vmatprep.subr.mxu0 0.0
    %926 = vmatpush1.msra.mxu0 0.0
    %927 = vmatprep.subr.mxu0 0.0
    %928 = vmatpush1.msra.mxu0 0.0
    %929 = vmatprep.subr.mxu0 0.0
    %930 = vmatpush1.msra.mxu0 0.0
    %931 = vmatprep.subr.mxu0 0.0
    %932 = vmatpush1.msra.mxu0 0.0
    %933 = vmatprep.subr.mxu0 0.0
    %934 = vmatpush1.msra.mxu0 0.0
    %935 = vmatprep.subr.mxu0 0.0
    %936 = vmatpush1.msra.mxu0 0.0
    %937 = vmatprep.mubr.f32.mxu0 0.0
    %938 = vmatmul.mubr.f32.gmra.mrb[0].mxu0 %v852
    %v939 = vpop.f32.mrb[0].mxu0
    %v940 = vadd.f32 %v856, %v939
    %v941 = vpop.f32.mrb[0].mxu0
    %942 = vdwg.mxu0
    %v943 = vmul.f32 %v940, 0.5
    %v944 = vtanh.pop %v943
    %v945 = vmul.f32 %v944, 0.5
    %v946 = vadd.f32 %v945, 0.5
    %v947 = vld [vmem:[#allocation7 + $0x8] sm:$0xff]
    %v948 = vld [vmem:[#allocation7 + $0x28] sm:$0xff]
    %v949 = vld [vmem:[#allocation7 + $0x48] sm:$0xff]
    %v950 = vld [vmem:[#allocation7 + $0x68] sm:$0xff]
    %v951 = vld [vmem:[#allocation7 + $0x88] sm:$0xff]
    %v952 = vld [vmem:[#allocation7 + $0xa8] sm:$0xff]
    %v953 = vld [vmem:[#allocation7 + $0xc8] sm:$0xff]
    %v954 = vld [vmem:[#allocation7 + $0xe8] sm:$0xff]
    %v955 = vld [vmem:[#allocation7 + $0x108] sm:$0xff]
    %v956 = vld [vmem:[#allocation7 + $0x128] sm:$0xff]
    %v957 = vld [vmem:[#allocation7 + $0x148] sm:$0xff]
    %v958 = vld [vmem:[#allocation7 + $0x168] sm:$0xff]
    %v959 = vld [vmem:[#allocation7 + $0x188] sm:$0xff]
    %v960 = vld [vmem:[#allocation7 + $0x1a8] sm:$0xff]
    %v961 = vld [vmem:[#allocation7 + $0x1c8] sm:$0xff]
    %v962 = vld [vmem:[#allocation7 + $0x1e8] sm:$0xff]
    %v965 = vunpack.c.l.s4 1983009808
    %v966 = vunpack.c.0.s8 %v965
    %v967 = vlaneseq
    %v968 = vshrl.u32 %v967, 7
    %v969 = vsub.s32 %v966, %v968
    %v970 = vrot.slane %v856, %v969
    %v971 = vcombine.high %v970, %v970
    %973 = vmatprep.subr.mxu0 0.0
    %974 = vmatpush1.msra.mxu0 %v947
    %975 = vmatprep.subr.mxu0 0.0
    %976 = vmatpush1.msra.mxu0 %v948
    %977 = vmatprep.subr.mxu0 0.0
    %978 = vmatpush1.msra.mxu0 %v949
    %979 = vmatprep.subr.mxu0 0.0
    %980 = vmatpush1.msra.mxu0 %v950
    %981 = vmatprep.subr.mxu0 0.0
    %982 = vmatpush1.msra.mxu0 %v951
    %983 = vmatprep.subr.mxu0 0.0
    %984 = vmatpush1.msra.mxu0 %v952
    %985 = vmatprep.subr.mxu0 0.0
    %986 = vmatpush1.msra.mxu0 %v953
    %987 = vmatprep.subr.mxu0 0.0
    %988 = vmatpush1.msra.mxu0 %v954
    %989 = vmatprep.subr.mxu0 0.0
    %990 = vmatpush1.msra.mxu0 %v955
    %991 = vmatprep.subr.mxu0 0.0
    %992 = vmatpush1.msra.mxu0 %v956
    %993 = vmatprep.subr.mxu0 0.0
    %994 = vmatpush1.msra.mxu0 %v957
    %995 = vmatprep.subr.mxu0 0.0
    %996 = vmatpush1.msra.mxu0 %v958
    %997 = vmatprep.subr.mxu0 0.0
    %998 = vmatpush1.msra.mxu0 %v959
    %999 = vmatprep.subr.mxu0 0.0
    %1000 = vmatpush1.msra.mxu0 %v960
    %1001 = vmatprep.subr.mxu0 0.0
    %1002 = vmatpush1.msra.mxu0 %v961
    %1003 = vmatprep.subr.mxu0 0.0
    %1004 = vmatpush1.msra.mxu0 %v962
    %1005 = vmatprep.subr.mxu0 0.0
    %1006 = vmatpush1.msra.mxu0 0.0
    %1007 = vmatprep.subr.mxu0 0.0
    %1008 = vmatpush1.msra.mxu0 0.0
    %1009 = vmatprep.subr.mxu0 0.0
    %1010 = vmatpush1.msra.mxu0 0.0
    %1011 = vmatprep.subr.mxu0 0.0
    %1012 = vmatpush1.msra.mxu0 0.0
    %1013 = vmatprep.subr.mxu0 0.0
    %1014 = vmatpush1.msra.mxu0 0.0
    %1015 = vmatprep.subr.mxu0 0.0
    %1016 = vmatpush1.msra.mxu0 0.0
    %1017 = vmatprep.subr.mxu0 0.0
    %1018 = vmatpush1.msra.mxu0 0.0
    %1019 = vmatprep.subr.mxu0 0.0
    %1020 = vmatpush1.msra.mxu0 0.0
    %1021 = vmatprep.subr.mxu0 0.0
    %1022 = vmatpush1.msra.mxu0 0.0
    %1023 = vmatprep.subr.mxu0 0.0
    %1024 = vmatpush1.msra.mxu0 0.0
    %1025 = vmatprep.subr.mxu0 0.0
    %1026 = vmatpush1.msra.mxu0 0.0
    %1027 = vmatprep.subr.mxu0 0.0
    %1028 = vmatpush1.msra.mxu0 0.0
    %1029 = vmatprep.subr.mxu0 0.0
    %1030 = vmatpush1.msra.mxu0 0.0
    %1031 = vmatprep.subr.mxu0 0.0
    %1032 = vmatpush1.msra.mxu0 0.0
    %1033 = vmatprep.subr.mxu0 0.0
    %1034 = vmatpush1.msra.mxu0 0.0
    %1035 = vmatprep.subr.mxu0 0.0
    %1036 = vmatpush1.msra.mxu0 0.0
    %1037 = vmatprep.mubr.f32.mxu0 0.0
    %1038 = vmatmul.mubr.f32.gmra.mrb[0].mxu0 %v852
    %v1039 = vpop.f32.mrb[0].mxu0
    %v1040 = vadd.f32 %v971, %v1039
    %v1041 = vpop.f32.mrb[0].mxu0
    %1042 = vdwg.mxu0
    %v1043 = vmul.f32 %v1040, 0.5
    %v1044 = vtanh.pop %v1043
    %v1045 = vmul.f32 %v1044, 0.5
    %v1046 = vadd.f32 %v1045, 0.5
    %v1047 = vld [vmem:[#allocation7 + $0x10] sm:$0xff]
    %v1048 = vld [vmem:[#allocation7 + $0x30] sm:$0xff]
    %v1049 = vld [vmem:[#allocation7 + $0x50] sm:$0xff]
    %v1050 = vld [vmem:[#allocation7 + $0x70] sm:$0xff]
    %v1051 = vld [vmem:[#allocation7 + $0x90] sm:$0xff]
    %v1052 = vld [vmem:[#allocation7 + $0xb0] sm:$0xff]
    %v1053 = vld [vmem:[#allocation7 + $0xd0] sm:$0xff]
    %v1054 = vld [vmem:[#allocation7 + $0xf0] sm:$0xff]
    %v1055 = vld [vmem:[#allocation7 + $0x110] sm:$0xff]
    %v1056 = vld [vmem:[#allocation7 + $0x130] sm:$0xff]
    %v1057 = vld [vmem:[#allocation7 + $0x150] sm:$0xff]
    %v1058 = vld [vmem:[#allocation7 + $0x170] sm:$0xff]
    %v1059 = vld [vmem:[#allocation7 + $0x190] sm:$0xff]
    %v1060 = vld [vmem:[#allocation7 + $0x1b0] sm:$0xff]
    %v1061 = vld [vmem:[#allocation7 + $0x1d0] sm:$0xff]
    %v1062 = vld [vmem:[#allocation7 + $0x1f0] sm:$0xff]
    %v1063 = vcombine.high %v856, %v856
    %v1065 = vunpack.c.l.s4 1983009808
    %v1066 = vunpack.c.0.s8 %v1065
    %v1067 = vlaneseq
    %v1068 = vshrl.u32 %v1067, 7
    %v1069 = vsub.s32 %v1066, %v1068
    %v1070 = vrot.slane %v1063, %v1069
    %1072 = vmatprep.subr.mxu0 0.0
    %1073 = vmatpush1.msra.mxu0 %v1047
    %1074 = vmatprep.subr.mxu0 0.0
    %1075 = vmatpush1.msra.mxu0 %v1048
    %1076 = vmatprep.subr.mxu0 0.0
    %1077 = vmatpush1.msra.mxu0 %v1049
    %1078 = vmatprep.subr.mxu0 0.0
    %1079 = vmatpush1.msra.mxu0 %v1050
    %1080 = vmatprep.subr.mxu0 0.0
    %1081 = vmatpush1.msra.mxu0 %v1051
    %1082 = vmatprep.subr.mxu0 0.0
    %1083 = vmatpush1.msra.mxu0 %v1052
    %1084 = vmatprep.subr.mxu0 0.0
    %1085 = vmatpush1.msra.mxu0 %v1053
    %1086 = vmatprep.subr.mxu0 0.0
    %1087 = vmatpush1.msra.mxu0 %v1054
    %1088 = vmatprep.subr.mxu0 0.0
    %1089 = vmatpush1.msra.mxu0 %v1055
    %1090 = vmatprep.subr.mxu0 0.0
    %1091 = vmatpush1.msra.mxu0 %v1056
    %1092 = vmatprep.subr.mxu0 0.0
    %1093 = vmatpush1.msra.mxu0 %v1057
    %1094 = vmatprep.subr.mxu0 0.0
    %1095 = vmatpush1.msra.mxu0 %v1058
    %1096 = vmatprep.subr.mxu0 0.0
    %1097 = vmatpush1.msra.mxu0 %v1059
    %1098 = vmatprep.subr.mxu0 0.0
    %1099 = vmatpush1.msra.mxu0 %v1060
    %1100 = vmatprep.subr.mxu0 0.0
    %1101 = vmatpush1.msra.mxu0 %v1061
    %1102 = vmatprep.subr.mxu0 0.0
    %1103 = vmatpush1.msra.mxu0 %v1062
    %1104 = vmatprep.subr.mxu0 0.0
    %1105 = vmatpush1.msra.mxu0 0.0
    %1106 = vmatprep.subr.mxu0 0.0
    %1107 = vmatpush1.msra.mxu0 0.0
    %1108 = vmatprep.subr.mxu0 0.0
    %1109 = vmatpush1.msra.mxu0 0.0
    %1110 = vmatprep.subr.mxu0 0.0
    %1111 = vmatpush1.msra.mxu0 0.0
    %1112 = vmatprep.subr.mxu0 0.0
    %1113 = vmatpush1.msra.mxu0 0.0
    %1114 = vmatprep.subr.mxu0 0.0
    %1115 = vmatpush1.msra.mxu0 0.0
    %1116 = vmatprep.subr.mxu0 0.0
    %1117 = vmatpush1.msra.mxu0 0.0
    %1118 = vmatprep.subr.mxu0 0.0
    %1119 = vmatpush1.msra.mxu0 0.0
    %1120 = vmatprep.subr.mxu0 0.0
    %1121 = vmatpush1.msra.mxu0 0.0
    %1122 = vmatprep.subr.mxu0 0.0
    %1123 = vmatpush1.msra.mxu0 0.0
    %1124 = vmatprep.subr.mxu0 0.0
    %1125 = vmatpush1.msra.mxu0 0.0
    %1126 = vmatprep.subr.mxu0 0.0
    %1127 = vmatpush1.msra.mxu0 0.0
    %1128 = vmatprep.subr.mxu0 0.0
    %1129 = vmatpush1.msra.mxu0 0.0
    %1130 = vmatprep.subr.mxu0 0.0
    %1131 = vmatpush1.msra.mxu0 0.0
    %1132 = vmatprep.subr.mxu0 0.0
    %1133 = vmatpush1.msra.mxu0 0.0
    %1134 = vmatprep.subr.mxu0 0.0
    %1135 = vmatpush1.msra.mxu0 0.0
    %1136 = vmatprep.mubr.f32.mxu0 0.0
    %1137 = vmatmul.mubr.f32.gmra.mrb[0].mxu0 %v852
    %v1138 = vpop.f32.mrb[0].mxu0
    %v1139 = vadd.f32 %v1070, %v1138
    %v1140 = vpop.f32.mrb[0].mxu0
    %1141 = vdwg.mxu0
    %v1142 = vtanh.pop %v1139
    %v1143 = vld [vmem:[#allocation7 + $0x18] sm:$0xff]
    %v1144 = vld [vmem:[#allocation7 + $0x38] sm:$0xff]
    %v1145 = vld [vmem:[#allocation7 + $0x58] sm:$0xff]
    %v1146 = vld [vmem:[#allocation7 + $0x78] sm:$0xff]
    %v1147 = vld [vmem:[#allocation7 + $0x98] sm:$0xff]
    %v1148 = vld [vmem:[#allocation7 + $0xb8] sm:$0xff]
    %v1149 = vld [vmem:[#allocation7 + $0xd8] sm:$0xff]
    %v1150 = vld [vmem:[#allocation7 + $0xf8] sm:$0xff]
    %v1151 = vld [vmem:[#allocation7 + $0x118] sm:$0xff]
    %v1152 = vld [vmem:[#allocation7 + $0x138] sm:$0xff]
    %v1153 = vld [vmem:[#allocation7 + $0x158] sm:$0xff]
    %v1154 = vld [vmem:[#allocation7 + $0x178] sm:$0xff]
    %v1155 = vld [vmem:[#allocation7 + $0x198] sm:$0xff]
    %v1156 = vld [vmem:[#allocation7 + $0x1b8] sm:$0xff]
    %v1157 = vld [vmem:[#allocation7 + $0x1d8] sm:$0xff]
    %v1158 = vld [vmem:[#allocation7 + $0x1f8] sm:$0xff]
    %v1159 = vcombine.high %v1070, %v1070
    %1161 = vmatprep.subr.mxu0 0.0
    %1162 = vmatpush1.msra.mxu0 %v1143
    %1163 = vmatprep.subr.mxu0 0.0
    %1164 = vmatpush1.msra.mxu0 %v1144
    %1165 = vmatprep.subr.mxu0 0.0
    %1166 = vmatpush1.msra.mxu0 %v1145
    %1167 = vmatprep.subr.mxu0 0.0
    %1168 = vmatpush1.msra.mxu0 %v1146
    %1169 = vmatprep.subr.mxu0 0.0
    %1170 = vmatpush1.msra.mxu0 %v1147
    %1171 = vmatprep.subr.mxu0 0.0
    %1172 = vmatpush1.msra.mxu0 %v1148
    %1173 = vmatprep.subr.mxu0 0.0
    %1174 = vmatpush1.msra.mxu0 %v1149
    %1175 = vmatprep.subr.mxu0 0.0
    %1176 = vmatpush1.msra.mxu0 %v1150
    %1177 = vmatprep.subr.mxu0 0.0
    %1178 = vmatpush1.msra.mxu0 %v1151
    %1179 = vmatprep.subr.mxu0 0.0
    %1180 = vmatpush1.msra.mxu0 %v1152
    %1181 = vmatprep.subr.mxu0 0.0
    %1182 = vmatpush1.msra.mxu0 %v1153
    %1183 = vmatprep.subr.mxu0 0.0
    %1184 = vmatpush1.msra.mxu0 %v1154
    %1185 = vmatprep.subr.mxu0 0.0
    %1186 = vmatpush1.msra.mxu0 %v1155
    %1187 = vmatprep.subr.mxu0 0.0
    %1188 = vmatpush1.msra.mxu0 %v1156
    %1189 = vmatprep.subr.mxu0 0.0
    %1190 = vmatpush1.msra.mxu0 %v1157
    %1191 = vmatprep.subr.mxu0 0.0
    %1192 = vmatpush1.msra.mxu0 %v1158
    %1193 = vmatprep.subr.mxu0 0.0
    %1194 = vmatpush1.msra.mxu0 0.0
    %1195 = vmatprep.subr.mxu0 0.0
    %1196 = vmatpush1.msra.mxu0 0.0
    %1197 = vmatprep.subr.mxu0 0.0
    %1198 = vmatpush1.msra.mxu0 0.0
    %1199 = vmatprep.subr.mxu0 0.0
    %1200 = vmatpush1.msra.mxu0 0.0
    %1201 = vmatprep.subr.mxu0 0.0
    %1202 = vmatpush1.msra.mxu0 0.0
    %1203 = vmatprep.subr.mxu0 0.0
    %1204 = vmatpush1.msra.mxu0 0.0
    %1205 = vmatprep.subr.mxu0 0.0
    %1206 = vmatpush1.msra.mxu0 0.0
    %1207 = vmatprep.subr.mxu0 0.0
    %1208 = vmatpush1.msra.mxu0 0.0
    %1209 = vmatprep.subr.mxu0 0.0
    %1210 = vmatpush1.msra.mxu0 0.0
    %1211 = vmatprep.subr.mxu0 0.0
    %1212 = vmatpush1.msra.mxu0 0.0
    %1213 = vmatprep.subr.mxu0 0.0
    %1214 = vmatpush1.msra.mxu0 0.0
    %1215 = vmatprep.subr.mxu0 0.0
    %1216 = vmatpush1.msra.mxu0 0.0
    %1217 = vmatprep.subr.mxu0 0.0
    %1218 = vmatpush1.msra.mxu0 0.0
    %1219 = vmatprep.subr.mxu0 0.0
    %1220 = vmatpush1.msra.mxu0 0.0
    %1221 = vmatprep.subr.mxu0 0.0
    %1222 = vmatpush1.msra.mxu0 0.0
    %1223 = vmatprep.subr.mxu0 0.0
    %1224 = vmatpush1.msra.mxu0 0.0
    %1225 = vmatprep.mubr.f32.mxu0 0.0
    %1226 = vmatmul.mubr.f32.gmra.mrb[0].mxu0 %v852
    %v1227 = vpop.f32.mrb[0].mxu0
    %v1228 = vadd.f32 %v1159, %v1227
    %v1229 = vpop.f32.mrb[0].mxu0
    %1230 = vdwg.mxu0
    %v1231 = vmul.f32 %v1228, 0.5
    %v1232 = vtanh.pop %v1231
    %v1233 = vmul.f32 %v1232, 0.5
    %v1234 = vadd.f32 %v1233, 0.5
    %v1235 = vmul.f32 %v1046, %v850
    %v1236 = vmul.f32 %v946, %v1142
    %v1237 = vadd.f32 %v1235, %v1236
    %v1238 = vtanh.pop %v1237
    %v1239 = vmul.f32 %v1234, %v1238
    %s1240 = scalar_lea.vmem [#allocation12], 4
    %1241 = vst [vmem:[%s1240] sm:$0x3] %v1239
    %s1242 = scalar_lea.vmem [#allocation4], 24
    %v1243 = vld [vmem:[%s1242] sm:$0xff]
    %v1244 = vld [vmem:[#allocation7] sm:$0xff]
    %v1245 = vld [vmem:[#allocation7 + $0x20] sm:$0xff]
    %v1246 = vld [vmem:[#allocation7 + $0x40] sm:$0xff]
    %v1247 = vld [vmem:[#allocation7 + $0x60] sm:$0xff]
    %v1248 = vld [vmem:[#allocation7 + $0x80] sm:$0xff]
    %v1249 = vld [vmem:[#allocation7 + $0xa0] sm:$0xff]
    %v1250 = vld [vmem:[#allocation7 + $0xc0] sm:$0xff]
    %v1251 = vld [vmem:[#allocation7 + $0xe0] sm:$0xff]
    %v1252 = vld [vmem:[#allocation7 + $0x100] sm:$0xff]
    %v1253 = vld [vmem:[#allocation7 + $0x120] sm:$0xff]
    %v1254 = vld [vmem:[#allocation7 + $0x140] sm:$0xff]
    %v1255 = vld [vmem:[#allocation7 + $0x160] sm:$0xff]
    %v1256 = vld [vmem:[#allocation7 + $0x180] sm:$0xff]
    %v1257 = vld [vmem:[#allocation7 + $0x1a0] sm:$0xff]
    %v1258 = vld [vmem:[#allocation7 + $0x1c0] sm:$0xff]
    %v1259 = vld [vmem:[#allocation7 + $0x1e0] sm:$0xff]
    %1260 = vmatprep.subr.mxu0 0.0
    %1261 = vmatpush1.msra.mxu0 %v1244
    %1262 = vmatprep.subr.mxu0 0.0
    %1263 = vmatpush1.msra.mxu0 %v1245
    %1264 = vmatprep.subr.mxu0 0.0
    %1265 = vmatpush1.msra.mxu0 %v1246
    %1266 = vmatprep.subr.mxu0 0.0
    %1267 = vmatpush1.msra.mxu0 %v1247
    %1268 = vmatprep.subr.mxu0 0.0
    %1269 = vmatpush1.msra.mxu0 %v1248
    %1270 = vmatprep.subr.mxu0 0.0
    %1271 = vmatpush1.msra.mxu0 %v1249
    %1272 = vmatprep.subr.mxu0 0.0
    %1273 = vmatpush1.msra.mxu0 %v1250
    %1274 = vmatprep.subr.mxu0 0.0
    %1275 = vmatpush1.msra.mxu0 %v1251
    %1276 = vmatprep.subr.mxu0 0.0
    %1277 = vmatpush1.msra.mxu0 %v1252
    %1278 = vmatprep.subr.mxu0 0.0
    %1279 = vmatpush1.msra.mxu0 %v1253
    %1280 = vmatprep.subr.mxu0 0.0
    %1281 = vmatpush1.msra.mxu0 %v1254
    %1282 = vmatprep.subr.mxu0 0.0
    %1283 = vmatpush1.msra.mxu0 %v1255
    %1284 = vmatprep.subr.mxu0 0.0
    %1285 = vmatpush1.msra.mxu0 %v1256
    %1286 = vmatprep.subr.mxu0 0.0
    %1287 = vmatpush1.msra.mxu0 %v1257
    %1288 = vmatprep.subr.mxu0 0.0
    %1289 = vmatpush1.msra.mxu0 %v1258
    %1290 = vmatprep.subr.mxu0 0.0
    %1291 = vmatpush1.msra.mxu0 %v1259
    %1292 = vmatprep.subr.mxu0 0.0
    %1293 = vmatpush1.msra.mxu0 0.0
    %1294 = vmatprep.subr.mxu0 0.0
    %1295 = vmatpush1.msra.mxu0 0.0
    %1296 = vmatprep.subr.mxu0 0.0
    %1297 = vmatpush1.msra.mxu0 0.0
    %1298 = vmatprep.subr.mxu0 0.0
    %1299 = vmatpush1.msra.mxu0 0.0
    %1300 = vmatprep.subr.mxu0 0.0
    %1301 = vmatpush1.msra.mxu0 0.0
    %1302 = vmatprep.subr.mxu0 0.0
    %1303 = vmatpush1.msra.mxu0 0.0
    %1304 = vmatprep.subr.mxu0 0.0
    %1305 = vmatpush1.msra.mxu0 0.0
    %1306 = vmatprep.subr.mxu0 0.0
    %1307 = vmatpush1.msra.mxu0 0.0
    %1308 = vmatprep.subr.mxu0 0.0
    %1309 = vmatpush1.msra.mxu0 0.0
    %1310 = vmatprep.subr.mxu0 0.0
    %1311 = vmatpush1.msra.mxu0 0.0
    %1312 = vmatprep.subr.mxu0 0.0
    %1313 = vmatpush1.msra.mxu0 0.0
    %1314 = vmatprep.subr.mxu0 0.0
    %1315 = vmatpush1.msra.mxu0 0.0
    %1316 = vmatprep.subr.mxu0 0.0
    %1317 = vmatpush1.msra.mxu0 0.0
    %1318 = vmatprep.subr.mxu0 0.0
    %1319 = vmatpush1.msra.mxu0 0.0
    %1320 = vmatprep.subr.mxu0 0.0
    %1321 = vmatpush1.msra.mxu0 0.0
    %1322 = vmatprep.subr.mxu0 0.0
    %1323 = vmatpush1.msra.mxu0 0.0
    %1324 = vmatprep.mubr.f32.mxu0 0.0
    %1325 = vmatmul.mubr.f32.gmra.mrb[0].mxu0 %v1239
    %v1326 = vpop.f32.mrb[0].mxu0
    %v1327 = vadd.f32 %v1243, %v1326
    %v1328 = vpop.f32.mrb[0].mxu0
    %1329 = vdwg.mxu0
    %v1330 = vmul.f32 %v1327, 0.5
    %v1331 = vtanh.pop %v1330
    %v1332 = vmul.f32 %v1331, 0.5
    %v1333 = vadd.f32 %v1332, 0.5
    %v1334 = vld [vmem:[#allocation7 + $0x8] sm:$0xff]
    %v1335 = vld [vmem:[#allocation7 + $0x28] sm:$0xff]
    %v1336 = vld [vmem:[#allocation7 + $0x48] sm:$0xff]
    %v1337 = vld [vmem:[#allocation7 + $0x68] sm:$0xff]
    %v1338 = vld [vmem:[#allocation7 + $0x88] sm:$0xff]
    %v1339 = vld [vmem:[#allocation7 + $0xa8] sm:$0xff]
    %v1340 = vld [vmem:[#allocation7 + $0xc8] sm:$0xff]
    %v1341 = vld [vmem:[#allocation7 + $0xe8] sm:$0xff]
    %v1342 = vld [vmem:[#allocation7 + $0x108] sm:$0xff]
    %v1343 = vld [vmem:[#allocation7 + $0x128] sm:$0xff]
    %v1344 = vld [vmem:[#allocation7 + $0x148] sm:$0xff]
    %v1345 = vld [vmem:[#allocation7 + $0x168] sm:$0xff]
    %v1346 = vld [vmem:[#allocation7 + $0x188] sm:$0xff]
    %v1347 = vld [vmem:[#allocation7 + $0x1a8] sm:$0xff]
    %v1348 = vld [vmem:[#allocation7 + $0x1c8] sm:$0xff]
    %v1349 = vld [vmem:[#allocation7 + $0x1e8] sm:$0xff]
    %v1352 = vunpack.c.l.s4 1983009808
    %v1353 = vunpack.c.0.s8 %v1352
    %v1354 = vlaneseq
    %v1355 = vshrl.u32 %v1354, 7
    %v1356 = vsub.s32 %v1353, %v1355
    %v1357 = vrot.slane %v1243, %v1356
    %v1358 = vcombine.high %v1357, %v1357
    %1360 = vmatprep.subr.mxu0 0.0
    %1361 = vmatpush1.msra.mxu0 %v1334
    %1362 = vmatprep.subr.mxu0 0.0
    %1363 = vmatpush1.msra.mxu0 %v1335
    %1364 = vmatprep.subr.mxu0 0.0
    %1365 = vmatpush1.msra.mxu0 %v1336
    %1366 = vmatprep.subr.mxu0 0.0
    %1367 = vmatpush1.msra.mxu0 %v1337
    %1368 = vmatprep.subr.mxu0 0.0
    %1369 = vmatpush1.msra.mxu0 %v1338
    %1370 = vmatprep.subr.mxu0 0.0
    %1371 = vmatpush1.msra.mxu0 %v1339
    %1372 = vmatprep.subr.mxu0 0.0
    %1373 = vmatpush1.msra.mxu0 %v1340
    %1374 = vmatprep.subr.mxu0 0.0
    %1375 = vmatpush1.msra.mxu0 %v1341
    %1376 = vmatprep.subr.mxu0 0.0
    %1377 = vmatpush1.msra.mxu0 %v1342
    %1378 = vmatprep.subr.mxu0 0.0
    %1379 = vmatpush1.msra.mxu0 %v1343
    %1380 = vmatprep.subr.mxu0 0.0
    %1381 = vmatpush1.msra.mxu0 %v1344
    %1382 = vmatprep.subr.mxu0 0.0
    %1383 = vmatpush1.msra.mxu0 %v1345
    %1384 = vmatprep.subr.mxu0 0.0
    %1385 = vmatpush1.msra.mxu0 %v1346
    %1386 = vmatprep.subr.mxu0 0.0
    %1387 = vmatpush1.msra.mxu0 %v1347
    %1388 = vmatprep.subr.mxu0 0.0
    %1389 = vmatpush1.msra.mxu0 %v1348
    %1390 = vmatprep.subr.mxu0 0.0
    %1391 = vmatpush1.msra.mxu0 %v1349
    %1392 = vmatprep.subr.mxu0 0.0
    %1393 = vmatpush1.msra.mxu0 0.0
    %1394 = vmatprep.subr.mxu0 0.0
    %1395 = vmatpush1.msra.mxu0 0.0
    %1396 = vmatprep.subr.mxu0 0.0
    %1397 = vmatpush1.msra.mxu0 0.0
    %1398 = vmatprep.subr.mxu0 0.0
    %1399 = vmatpush1.msra.mxu0 0.0
    %1400 = vmatprep.subr.mxu0 0.0
    %1401 = vmatpush1.msra.mxu0 0.0
    %1402 = vmatprep.subr.mxu0 0.0
    %1403 = vmatpush1.msra.mxu0 0.0
    %1404 = vmatprep.subr.mxu0 0.0
    %1405 = vmatpush1.msra.mxu0 0.0
    %1406 = vmatprep.subr.mxu0 0.0
    %1407 = vmatpush1.msra.mxu0 0.0
    %1408 = vmatprep.subr.mxu0 0.0
    %1409 = vmatpush1.msra.mxu0 0.0
    %1410 = vmatprep.subr.mxu0 0.0
    %1411 = vmatpush1.msra.mxu0 0.0
    %1412 = vmatprep.subr.mxu0 0.0
    %1413 = vmatpush1.msra.mxu0 0.0
    %1414 = vmatprep.subr.mxu0 0.0
    %1415 = vmatpush1.msra.mxu0 0.0
    %1416 = vmatprep.subr.mxu0 0.0
    %1417 = vmatpush1.msra.mxu0 0.0
    %1418 = vmatprep.subr.mxu0 0.0
    %1419 = vmatpush1.msra.mxu0 0.0
    %1420 = vmatprep.subr.mxu0 0.0
    %1421 = vmatpush1.msra.mxu0 0.0
    %1422 = vmatprep.subr.mxu0 0.0
    %1423 = vmatpush1.msra.mxu0 0.0
    %1424 = vmatprep.mubr.f32.mxu0 0.0
    %1425 = vmatmul.mubr.f32.gmra.mrb[0].mxu0 %v1239
    %v1426 = vpop.f32.mrb[0].mxu0
    %v1427 = vadd.f32 %v1358, %v1426
    %v1428 = vpop.f32.mrb[0].mxu0
    %1429 = vdwg.mxu0
    %v1430 = vmul.f32 %v1427, 0.5
    %v1431 = vtanh.pop %v1430
    %v1432 = vmul.f32 %v1431, 0.5
    %v1433 = vadd.f32 %v1432, 0.5
    %v1434 = vld [vmem:[#allocation7 + $0x10] sm:$0xff]
    %v1435 = vld [vmem:[#allocation7 + $0x30] sm:$0xff]
    %v1436 = vld [vmem:[#allocation7 + $0x50] sm:$0xff]
    %v1437 = vld [vmem:[#allocation7 + $0x70] sm:$0xff]
    %v1438 = vld [vmem:[#allocation7 + $0x90] sm:$0xff]
    %v1439 = vld [vmem:[#allocation7 + $0xb0] sm:$0xff]
    %v1440 = vld [vmem:[#allocation7 + $0xd0] sm:$0xff]
    %v1441 = vld [vmem:[#allocation7 + $0xf0] sm:$0xff]
    %v1442 = vld [vmem:[#allocation7 + $0x110] sm:$0xff]
    %v1443 = vld [vmem:[#allocation7 + $0x130] sm:$0xff]
    %v1444 = vld [vmem:[#allocation7 + $0x150] sm:$0xff]
    %v1445 = vld [vmem:[#allocation7 + $0x170] sm:$0xff]
    %v1446 = vld [vmem:[#allocation7 + $0x190] sm:$0xff]
    %v1447 = vld [vmem:[#allocation7 + $0x1b0] sm:$0xff]
    %v1448 = vld [vmem:[#allocation7 + $0x1d0] sm:$0xff]
    %v1449 = vld [vmem:[#allocation7 + $0x1f0] sm:$0xff]
    %v1450 = vcombine.high %v1243, %v1243
    %v1452 = vunpack.c.l.s4 1983009808
    %v1453 = vunpack.c.0.s8 %v1452
    %v1454 = vlaneseq
    %v1455 = vshrl.u32 %v1454, 7
    %v1456 = vsub.s32 %v1453, %v1455
    %v1457 = vrot.slane %v1450, %v1456
    %1459 = vmatprep.subr.mxu0 0.0
    %1460 = vmatpush1.msra.mxu0 %v1434
    %1461 = vmatprep.subr.mxu0 0.0
    %1462 = vmatpush1.msra.mxu0 %v1435
    %1463 = vmatprep.subr.mxu0 0.0
    %1464 = vmatpush1.msra.mxu0 %v1436
    %1465 = vmatprep.subr.mxu0 0.0
    %1466 = vmatpush1.msra.mxu0 %v1437
    %1467 = vmatprep.subr.mxu0 0.0
    %1468 = vmatpush1.msra.mxu0 %v1438
    %1469 = vmatprep.subr.mxu0 0.0
    %1470 = vmatpush1.msra.mxu0 %v1439
    %1471 = vmatprep.subr.mxu0 0.0
    %1472 = vmatpush1.msra.mxu0 %v1440
    %1473 = vmatprep.subr.mxu0 0.0
    %1474 = vmatpush1.msra.mxu0 %v1441
    %1475 = vmatprep.subr.mxu0 0.0
    %1476 = vmatpush1.msra.mxu0 %v1442
    %1477 = vmatprep.subr.mxu0 0.0
    %1478 = vmatpush1.msra.mxu0 %v1443
    %1479 = vmatprep.subr.mxu0 0.0
    %1480 = vmatpush1.msra.mxu0 %v1444
    %1481 = vmatprep.subr.mxu0 0.0
    %1482 = vmatpush1.msra.mxu0 %v1445
    %1483 = vmatprep.subr.mxu0 0.0
    %1484 = vmatpush1.msra.mxu0 %v1446
    %1485 = vmatprep.subr.mxu0 0.0
    %1486 = vmatpush1.msra.mxu0 %v1447
    %1487 = vmatprep.subr.mxu0 0.0
    %1488 = vmatpush1.msra.mxu0 %v1448
    %1489 = vmatprep.subr.mxu0 0.0
    %1490 = vmatpush1.msra.mxu0 %v1449
    %1491 = vmatprep.subr.mxu0 0.0
    %1492 = vmatpush1.msra.mxu0 0.0
    %1493 = vmatprep.subr.mxu0 0.0
    %1494 = vmatpush1.msra.mxu0 0.0
    %1495 = vmatprep.subr.mxu0 0.0
    %1496 = vmatpush1.msra.mxu0 0.0
    %1497 = vmatprep.subr.mxu0 0.0
    %1498 = vmatpush1.msra.mxu0 0.0
    %1499 = vmatprep.subr.mxu0 0.0
    %1500 = vmatpush1.msra.mxu0 0.0
    %1501 = vmatprep.subr.mxu0 0.0
    %1502 = vmatpush1.msra.mxu0 0.0
    %1503 = vmatprep.subr.mxu0 0.0
    %1504 = vmatpush1.msra.mxu0 0.0
    %1505 = vmatprep.subr.mxu0 0.0
    %1506 = vmatpush1.msra.mxu0 0.0
    %1507 = vmatprep.subr.mxu0 0.0
    %1508 = vmatpush1.msra.mxu0 0.0
    %1509 = vmatprep.subr.mxu0 0.0
    %1510 = vmatpush1.msra.mxu0 0.0
    %1511 = vmatprep.subr.mxu0 0.0
    %1512 = vmatpush1.msra.mxu0 0.0
    %1513 = vmatprep.subr.mxu0 0.0
    %1514 = vmatpush1.msra.mxu0 0.0
    %1515 = vmatprep.subr.mxu0 0.0
    %1516 = vmatpush1.msra.mxu0 0.0
    %1517 = vmatprep.subr.mxu0 0.0
    %1518 = vmatpush1.msra.mxu0 0.0
    %1519 = vmatprep.subr.mxu0 0.0
    %1520 = vmatpush1.msra.mxu0 0.0
    %1521 = vmatprep.subr.mxu0 0.0
    %1522 = vmatpush1.msra.mxu0 0.0
    %1523 = vmatprep.mubr.f32.mxu0 0.0
    %1524 = vmatmul.mubr.f32.gmra.mrb[0].mxu0 %v1239
    %v1525 = vpop.f32.mrb[0].mxu0
    %v1526 = vadd.f32 %v1457, %v1525
    %v1527 = vpop.f32.mrb[0].mxu0
    %1528 = vdwg.mxu0
    %v1529 = vtanh.pop %v1526
    %v1530 = vld [vmem:[#allocation7 + $0x18] sm:$0xff]
    %v1531 = vld [vmem:[#allocation7 + $0x38] sm:$0xff]
    %v1532 = vld [vmem:[#allocation7 + $0x58] sm:$0xff]
    %v1533 = vld [vmem:[#allocation7 + $0x78] sm:$0xff]
    %v1534 = vld [vmem:[#allocation7 + $0x98] sm:$0xff]
    %v1535 = vld [vmem:[#allocation7 + $0xb8] sm:$0xff]
    %v1536 = vld [vmem:[#allocation7 + $0xd8] sm:$0xff]
    %v1537 = vld [vmem:[#allocation7 + $0xf8] sm:$0xff]
    %v1538 = vld [vmem:[#allocation7 + $0x118] sm:$0xff]
    %v1539 = vld [vmem:[#allocation7 + $0x138] sm:$0xff]
    %v1540 = vld [vmem:[#allocation7 + $0x158] sm:$0xff]
    %v1541 = vld [vmem:[#allocation7 + $0x178] sm:$0xff]
    %v1542 = vld [vmem:[#allocation7 + $0x198] sm:$0xff]
    %v1543 = vld [vmem:[#allocation7 + $0x1b8] sm:$0xff]
    %v1544 = vld [vmem:[#allocation7 + $0x1d8] sm:$0xff]
    %v1545 = vld [vmem:[#allocation7 + $0x1f8] sm:$0xff]
    %v1546 = vcombine.high %v1457, %v1457
    %1548 = vmatprep.subr.mxu0 0.0
    %1549 = vmatpush1.msra.mxu0 %v1530
    %1550 = vmatprep.subr.mxu0 0.0
    %1551 = vmatpush1.msra.mxu0 %v1531
    %1552 = vmatprep.subr.mxu0 0.0
    %1553 = vmatpush1.msra.mxu0 %v1532
    %1554 = vmatprep.subr.mxu0 0.0
    %1555 = vmatpush1.msra.mxu0 %v1533
    %1556 = vmatprep.subr.mxu0 0.0
    %1557 = vmatpush1.msra.mxu0 %v1534
    %1558 = vmatprep.subr.mxu0 0.0
    %1559 = vmatpush1.msra.mxu0 %v1535
    %1560 = vmatprep.subr.mxu0 0.0
    %1561 = vmatpush1.msra.mxu0 %v1536
    %1562 = vmatprep.subr.mxu0 0.0
    %1563 = vmatpush1.msra.mxu0 %v1537
    %1564 = vmatprep.subr.mxu0 0.0
    %1565 = vmatpush1.msra.mxu0 %v1538
    %1566 = vmatprep.subr.mxu0 0.0
    %1567 = vmatpush1.msra.mxu0 %v1539
    %1568 = vmatprep.subr.mxu0 0.0
    %1569 = vmatpush1.msra.mxu0 %v1540
    %1570 = vmatprep.subr.mxu0 0.0
    %1571 = vmatpush1.msra.mxu0 %v1541
    %1572 = vmatprep.subr.mxu0 0.0
    %1573 = vmatpush1.msra.mxu0 %v1542
    %1574 = vmatprep.subr.mxu0 0.0
    %1575 = vmatpush1.msra.mxu0 %v1543
    %1576 = vmatprep.subr.mxu0 0.0
    %1577 = vmatpush1.msra.mxu0 %v1544
    %1578 = vmatprep.subr.mxu0 0.0
    %1579 = vmatpush1.msra.mxu0 %v1545
    %1580 = vmatprep.subr.mxu0 0.0
    %1581 = vmatpush1.msra.mxu0 0.0
    %1582 = vmatprep.subr.mxu0 0.0
    %1583 = vmatpush1.msra.mxu0 0.0
    %1584 = vmatprep.subr.mxu0 0.0
    %1585 = vmatpush1.msra.mxu0 0.0
    %1586 = vmatprep.subr.mxu0 0.0
    %1587 = vmatpush1.msra.mxu0 0.0
    %1588 = vmatprep.subr.mxu0 0.0
    %1589 = vmatpush1.msra.mxu0 0.0
    %1590 = vmatprep.subr.mxu0 0.0
    %1591 = vmatpush1.msra.mxu0 0.0
    %1592 = vmatprep.subr.mxu0 0.0
    %1593 = vmatpush1.msra.mxu0 0.0
    %1594 = vmatprep.subr.mxu0 0.0
    %1595 = vmatpush1.msra.mxu0 0.0
    %1596 = vmatprep.subr.mxu0 0.0
    %1597 = vmatpush1.msra.mxu0 0.0
    %1598 = vmatprep.subr.mxu0 0.0
    %1599 = vmatpush1.msra.mxu0 0.0
    %1600 = vmatprep.subr.mxu0 0.0
    %1601 = vmatpush1.msra.mxu0 0.0
    %1602 = vmatprep.subr.mxu0 0.0
    %1603 = vmatpush1.msra.mxu0 0.0
    %1604 = vmatprep.subr.mxu0 0.0
    %1605 = vmatpush1.msra.mxu0 0.0
    %1606 = vmatprep.subr.mxu0 0.0
    %1607 = vmatpush1.msra.mxu0 0.0
    %1608 = vmatprep.subr.mxu0 0.0
    %1609 = vmatpush1.msra.mxu0 0.0
    %1610 = vmatprep.subr.mxu0 0.0
    %1611 = vmatpush1.msra.mxu0 0.0
    %1612 = vmatprep.mubr.f32.mxu0 0.0
    %1613 = vmatmul.mubr.f32.gmra.mrb[0].mxu0 %v1239
    %v1614 = vpop.f32.mrb[0].mxu0
    %v1615 = vadd.f32 %v1546, %v1614
    %v1616 = vpop.f32.mrb[0].mxu0
    %1617 = vdwg.mxu0
    %v1618 = vmul.f32 %v1615, 0.5
    %v1619 = vtanh.pop %v1618
    %v1620 = vmul.f32 %v1619, 0.5
    %v1621 = vadd.f32 %v1620, 0.5
    %v1622 = vmul.f32 %v1433, %v1237
    %v1623 = vmul.f32 %v1333, %v1529
    %v1624 = vadd.f32 %v1622, %v1623
    %v1625 = vtanh.pop %v1624
    %v1626 = vmul.f32 %v1621, %v1625
    %s1627 = scalar_lea.vmem [#allocation12], 6
    %1628 = vst [vmem:[%s1627] sm:$0x3] %v1626
    %1629 = vst [vmem:[#allocation2] sm:$0x3] %v1626
    %1630 = vst [vmem:[#allocation3] sm:$0x3] %v1624
    // Predicated region
    $region38: #{tpu_custom_call.1} parent=1 // pred_check
      %p1631 = pneg %p73
    $region39: #{tpu_custom_call.1} parent=1 // pred_check_branch
      %1633 = sbr.rel (%p1631) target = $region41
    $region40: #{tpu_custom_call.1} parent=1 // pred_region
      %1634 = vst [vmem:[#allocation13] sm:$0x3] %v1626
      %1635 = vst [vmem:[#allocation15] sm:$0x3] %v1624
    $region41: #{tpu_custom_call.1} parent=1 // pred_fallthru
      _
    // Predicated region
    $region42: #{tpu_custom_call.1} parent=1 // pred_check
      _
    $region43: #{tpu_custom_call.1} parent=1 // pred_check_branch
      %1637 = sbr.rel (0) target = $region45
    $region44: #{tpu_custom_call.1} parent=1 // pred_region
      %s1639 = ssub.s32 128, 128
      %1640 = vsyncadd [#allocation6], %s1639
      %s1641 = sshll.u32 [#allocation12], 4
      %s1642 = int_to_ptr.vmem [resolvable:$true] %s1641
      %1647 = dma.vmem_to_hbm [thread:$0]  %s1642, 128, %s4, [#allocation6], 32, 32, 2
    $region45: #{tpu_custom_call.1} parent=1 // pred_fallthru
      _
    // Predicated region
    $region46: #{tpu_custom_call.1} parent=1 // pred_check
      _
    $region47: #{tpu_custom_call.1} parent=1 // pred_check_branch
      %1649 = sbr.rel (0) target = $region49
    $region48: #{tpu_custom_call.1} parent=1 // pred_region
      %s1651 = ssub.s32 32, 32
      %1652 = vsyncadd [#allocation14], %s1651
      %s1654 = sshll.u32 [#allocation13], 4
      %s1655 = int_to_ptr.vmem [resolvable:$true] %s1654
      %1657 = dma.vmem_to_hbm [thread:$0]  %s1655, 32, %s5, [#allocation14]
    $region49: #{tpu_custom_call.1} parent=1 // pred_fallthru
      _
    // Predicated region
    $region50: #{tpu_custom_call.1} parent=1 // pred_check
      _
    $region51: #{tpu_custom_call.1} parent=1 // pred_check_branch
      %1659 = sbr.rel (0) target = $region53
    $region52: #{tpu_custom_call.1} parent=1 // pred_region
      %s1661 = ssub.s32 32, 32
      %1662 = vsyncadd [#allocation14], %s1661
      %s1664 = sshll.u32 [#allocation15], 4
      %s1665 = int_to_ptr.vmem [resolvable:$true] %s1664
      %1667 = dma.vmem_to_hbm [thread:$0]  %s1665, 32, %s6, [#allocation14]
    $region53: #{tpu_custom_call.1} parent=1 // pred_fallthru
      _
    // Predicated region
    $region54: #{tpu_custom_call.1} parent=1 // pred_check
      _
    $region55: #{tpu_custom_call.1} parent=1 // pred_check_branch
      %1669 = sbr.rel (0) target = $region57
    $region56: #{tpu_custom_call.1} parent=1 // pred_region
      %1670 = dma.done [#allocation6], 128
    $region57: #{tpu_custom_call.1} parent=1 // pred_fallthru
      _
    // Predicated region
    $region58: #{tpu_custom_call.1} parent=1 // pred_check
      _
    $region59: #{tpu_custom_call.1} parent=1 // pred_check_branch
      %1672 = sbr.rel (0) target = $region61
    $region60: #{tpu_custom_call.1} parent=1 // pred_region
      %1673 = dma.done [#allocation14], 32
    $region61: #{tpu_custom_call.1} parent=1 // pred_fallthru
      _
    // Predicated region
    $region62: #{tpu_custom_call.1} parent=1 // pred_check
      _
    $region63: #{tpu_custom_call.1} parent=1 // pred_check_branch
      %1675 = sbr.rel (0) target = $region65
    $region64: #{tpu_custom_call.1} parent=1 // pred_region
      %1676 = dma.done [#allocation14], 32
    $region65: #{tpu_custom_call.1} parent=1 // pred_fallthru
      _
    %1677 = vsyncpa [#allocation5], 1
    %1678 = vsyncpa [#allocation8], 1
    %1679 = vsyncpa [#allocation11], 1
    %1680 = vsyncpa [#allocation6], 1
    %1681 = vsyncpa [#allocation14], 1

</llo_original>
